<compile_context>
chip_gen: v7x
topology: tpu7x:2x2x1
jax: 0.10.0
libtpu: 0.0.40
codegen_flags: <defaults>
</compile_context>

<pallas_src>
import functools

import jax
import jax.numpy as jnp
import numpy as np
from jax.experimental import pallas as pl
from jax.experimental.pallas import tpu as pltpu


# -----------------------------------------------------------------------------
# Fused Pallas kernel: whole TCN for one batch block.
# -----------------------------------------------------------------------------
def _tcn_kernel(*refs, layer_defs, mxu_dtype):
    """refs = (x_ref, <per-layer packed weight refs...>, o_ref).

    Activations are (C, N) with time (x folded batch) on lanes.  Per-layer
    weights are row-stacked:
      conv1 stack: [W1_tap0 (if dilation < L); W1_tap1; W_downsample (if any)]
      conv2 stack: [W2_tap0 (if dilation < L); W2_tap1]
    """
    x_ref, o_ref = refs[0], refs[-1]
    wrefs = refs[1:-1]
    b_blk, _, L = x_ref.shape

    # Fold batch onto lanes: (b_blk, C, L) -> (C, b_blk*L) via lane concat only.
    if b_blk == 1:
        h = x_ref[0]
    else:
        h = jnp.concatenate([x_ref[j] for j in range(b_blk)], axis=1)
    h = h.astype(jnp.float32)

    # Hoisted per-segment time index (JAX does not CSE iota/broadcasts).
    t_loc = jax.lax.broadcasted_iota(jnp.int32, (1, L), 1)
    t_mod = t_loc if b_blk == 1 else jnp.concatenate([t_loc] * b_blk, axis=1)
    masks = {}
    for d, _, _, use_tap0 in layer_defs:
        if use_tap0 and d not in masks:
            masks[d] = t_mod < d            # (1, N) bool, broadcasts over sublanes

    def shift_tap(z, d):
        # y[:, t] = z[:, t-d] within each length-L segment, 0 for t < d.
        # pltpu.roll wraps across segments; wrapped lanes are exactly the
        # masked ones, so folded batch stays correct.
        return jnp.where(masks[d], 0.0, pltpu.roll(z, d, 1))

    i = 0
    for d, c_out, has_ds, use_tap0 in layer_defs:
        w1s, b1 = wrefs[i][...], wrefs[i + 1][...]
        w2s, b2 = wrefs[i + 2][...], wrefs[i + 3][...]
        i += 4
        if has_ds:
            bd = wrefs[i][...]
            i += 1

        x_in = h

        # conv1 taps + fused 1x1 downsample: ONE MXU pass over x_in.
        z = jnp.dot(w1s, x_in.astype(mxu_dtype),
                    preferred_element_type=jnp.float32)
        if use_tap0:
            pre1 = shift_tap(z[0:c_out], d) + z[c_out:2 * c_out]
            off = 2 * c_out
        else:                                # dilation >= L: tap-0 is all zero
            pre1 = z[0:c_out]
            off = c_out
        h1 = jnp.maximum(pre1 + b1, 0.0)     # chomp+ReLU (dropout = identity)

        # conv2 (row-stacked taps) on h1.
        z2 = jnp.dot(w2s, h1.astype(mxu_dtype),
                     preferred_element_type=jnp.float32)
        if use_tap0:
            pre2 = shift_tap(z2[0:c_out], d) + z2[c_out:2 * c_out]
        else:
            pre2 = z2[0:c_out]
        h2 = jnp.maximum(pre2 + b2, 0.0)

        # residual: 1x1-conv rows from the x_in matmul iff Cin != Cout.
        res = (z[off:off + c_out] + bd) if has_ds else x_in
        # TODO(synk): on v6e/v7x optionally keep h in bf16 to halve live
        # activation bytes (keep f32 on v5e: no bf16 VPU).
        h = jnp.maximum(h2 + res, 0.0)

    if b_blk == 1:
        o_ref[0] = h.astype(o_ref.dtype)
    else:
        for j in range(b_blk):               # lane-dense, 128-aligned stores
            o_ref[j] = h[:, j * L:(j + 1) * L].astype(o_ref.dtype)


def _vmem_limit_bytes():
    # ~100 MiB on v5e/v6e (128 MiB physical VMEM), ~54 MiB on v7x (64 MiB).
    try:
        cap = pltpu.get_tpu_info().vmem_capacity_bytes
        return int(min(0.85 * cap, 100 * 1024 * 1024))
    except Exception:
        return 64 * 1024 * 1024


def temporal_conv_net(x_ncl, params, *, mxu_dtype=jnp.bfloat16, batch_block=1):
    """TemporalConvNet.forward.  x_ncl: (B, C_in, L) -> (B, C_last, L), NCL.

    mxu_dtype: dtype fed to the MXU (bf16 default; bias/mask/residual/accum f32).
    batch_block: batch elements folded onto lanes per grid step.  Keep >= 2
      grid steps for v7x's two TensorCores; larger values fill the MXU N dim.
    """
    B, c_in, L = x_ncl.shape
    assert B % batch_block == 0, "batch must be divisible by batch_block"
    grid = (B // batch_block,)

    operands = [x_ncl.astype(jnp.float32)]
    in_specs = [pl.BlockSpec((batch_block, c_in, L), lambda b: (b, 0, 0))]

    def add_full(arr):
        # Weight/bias block index never changes across the grid -> fetched once.
        # TODO(synk): at realistic widths request single-buffering for these
        # constant blocks (pipeline_mode=pl.Buffered(1)) to halve weight VMEM.
        operands.append(arr)
        in_specs.append(pl.BlockSpec(arr.shape, lambda b, n=arr.ndim: (0,) * n))

    layer_defs = []
    flops = 0
    c = c_in
    for li, p in enumerate(params):
        d = 2 ** li
        c_out = p["w1"].shape[0]
        has_ds = c != c_out
        use_tap0 = d < L                  # dilation >= L: tap-0 never contributes
        layer_defs.append((d, c_out, has_ds, use_tap0))

        rows1 = ([p["w1"][:, :, 0]] if use_tap0 else []) + [p["w1"][:, :, 1]]
        if has_ds:
            rows1.append(p["wd"][:, :, 0])
        w1s = jnp.concatenate(rows1, axis=0).astype(mxu_dtype)
        rows2 = ([p["w2"][:, :, 0]] if use_tap0 else []) + [p["w2"][:, :, 1]]
        w2s = jnp.concatenate(rows2, axis=0).astype(mxu_dtype)

        add_full(w1s)
        add_full(p["b1"][:, None].astype(jnp.float32))
        add_full(w2s)
        add_full(p["b2"][:, None].astype(jnp.float32))
        if has_ds:
            add_full(p["bd"][:, None].astype(jnp.float32))

        flops += 2 * w1s.shape[0] * c * B * L + 2 * w2s.shape[0] * c_out * B * L
        c = c_out

    bytes_accessed = sum(int(o.size) * o.dtype.itemsize for o in operands)
    bytes_accessed += B * c * L * 4

    kernel = functools.partial(
        _tcn_kernel, layer_defs=tuple(layer_defs), mxu_dtype=mxu_dtype)

    return pl.pallas_call(
        kernel,
        out_shape=jax.ShapeDtypeStruct((B, c, L), jnp.float32),
        grid=grid,
        in_specs=in_specs,
        out_specs=pl.BlockSpec((batch_block, c, L), lambda b: (b, 0, 0)),
        compiler_params=pltpu.CompilerParams(
            dimension_semantics=("parallel",),
            vmem_limit_bytes=_vmem_limit_bytes()),
        cost_estimate=pl.CostEstimate(flops=int(flops), transcendentals=0,
                                      bytes_accessed=int(bytes_accessed)),
    )(*operands)


# -----------------------------------------------------------------------------
# Deterministic parameters in the PyTorch Conv1d layout (Cout, Cin, K).
# -----------------------------------------------------------------------------
def make_params(key, num_inputs, num_channels, kernel_size=2):
    # TODO(synk): general kernel_size would just add more row-stacked taps.
    assert kernel_size == 2
    params = []
    in_c = num_inputs
    for out_c in num_channels:
        key, k1, k2, k3, k4, k5, k6 = jax.random.split(key, 7)
        p = {
            "w1": 0.01 * jax.random.normal(k1, (out_c, in_c, 2), jnp.float32),
            "b1": 0.01 * jax.random.normal(k2, (out_c,), jnp.float32),
            "w2": 0.01 * jax.random.normal(k3, (out_c, out_c, 2), jnp.float32),
            "b2": 0.01 * jax.random.normal(k4, (out_c,), jnp.float32),
        }
        if in_c != out_c:
            p["wd"] = 0.01 * jax.random.normal(k5, (out_c, in_c, 1), jnp.float32)
            p["bd"] = 0.01 * jax.random.normal(k6, (out_c,), jnp.float32)
        params.append(p)
        in_c = out_c
    return params


# -----------------------------------------------------------------------------
# Pure-JAX reference (PyTorch semantics, NCL layout) for correctness checks.
# -----------------------------------------------------------------------------
_HI = jax.lax.Precision.HIGHEST


def _ref_causal_conv(x, w, b, d):
    L = x.shape[-1]
    x_shift = jnp.pad(x, ((0, 0), (0, 0), (d, 0)))[:, :, :L]      # x[t-d]
    y = (jnp.einsum("oc,bcl->bol", w[:, :, 0], x_shift, precision=_HI)
         + jnp.einsum("oc,bcl->bol", w[:, :, 1], x, precision=_HI))
    return y + b[None, :, None]


def _ref_block(x, p, d):
    h1 = jnp.maximum(_ref_causal_conv(x, p["w1"], p["b1"], d), 0.0)
    h2 = jnp.maximum(_ref_causal_conv(h1, p["w2"], p["b2"], d), 0.0)
    if "wd" in p:
        res = (jnp.einsum("oc,bcl->bol", p["wd"][:, :, 0], x, precision=_HI)
               + p["bd"][None, :, None])
    else:
        res = x
    return jnp.maximum(h2 + res, 0.0)


def ref_temporal_conv_net(x_ncl, params):
    h = x_ncl
    for i, p in enumerate(params):
        h = _ref_block(h, p, 2 ** i)
    return h


if __name__ == "__main__":
    key = jax.random.PRNGKey(0)
    kx, kp, kp2 = jax.random.split(key, 3)

    # Config 1: 3 blocks (dilations 1,2,4), downsample on layers 0 and 2.
    B, C_in, L = 2, 4, 128                 # L multiple of 128 -> lane-dense
    num_channels = [8, 8, 16]
    x = jax.random.normal(kx, (B, C_in, L), jnp.float32)          # NCL
    params = make_params(kp, C_in, num_channels, kernel_size=2)
    ref = jax.block_until_ready(ref_temporal_conv_net(x, params))

    # f32 MXU path, one batch element per grid step (2 parallel steps for v7x).
    out = jax.block_until_ready(
        temporal_conv_net(x, params, mxu_dtype=jnp.float32, batch_block=1))
    assert out.shape == (B, num_channels[-1], L)
    np.testing.assert_allclose(np.asarray(out), np.asarray(ref),
                               rtol=2e-3, atol=5e-4)

    # f32, batch folded onto lanes (mask becomes per-segment, MXU N dim = B*L).
    out_fold = jax.block_until_ready(
        temporal_conv_net(x, params, mxu_dtype=jnp.float32, batch_block=2))
    np.testing.assert_allclose(np.asarray(out_fold), np.asarray(ref),
                               rtol=2e-3, atol=5e-4)

    # Default bf16 MXU path (f32 accumulation / elementwise), folded batch.
    out_bf16 = jax.block_until_ready(
        temporal_conv_net(x, params, batch_block=2))
    np.testing.assert_allclose(np.asarray(out_bf16), np.asarray(ref),
                               rtol=5e-2, atol=2e-2)

    # Config 2: 8 blocks -> last dilation 128 >= L exercises the tap-0 skip.
    num_channels2 = [8] * 8
    params2 = make_params(kp2, C_in, num_channels2, kernel_size=2)
    ref2 = jax.block_until_ready(ref_temporal_conv_net(x, params2))
    out2 = jax.block_until_ready(
        temporal_conv_net(x, params2, mxu_dtype=jnp.float32, batch_block=1))
    np.testing.assert_allclose(np.asarray(out2), np.asarray(ref2),
                               rtol=2e-3, atol=1e-3)

    print("KERNEL_OK")
</pallas_src>

<mosaic_0001>
module attributes {stable_mosaic.version = 11 : i64} {
  func.func @_tcn_kernel(%arg0: i32, %arg1: memref<1x4x128xf32, #tpu.memory_space<vmem>>, %arg2: memref<24x4xf32, #tpu.memory_space<vmem>>, %arg3: memref<8x1xf32, #tpu.memory_space<vmem>>, %arg4: memref<16x8xf32, #tpu.memory_space<vmem>>, %arg5: memref<8x1xf32, #tpu.memory_space<vmem>>, %arg6: memref<8x1xf32, #tpu.memory_space<vmem>>, %arg7: memref<16x8xf32, #tpu.memory_space<vmem>>, %arg8: memref<8x1xf32, #tpu.memory_space<vmem>>, %arg9: memref<16x8xf32, #tpu.memory_space<vmem>>, %arg10: memref<8x1xf32, #tpu.memory_space<vmem>>, %arg11: memref<48x8xf32, #tpu.memory_space<vmem>>, %arg12: memref<16x1xf32, #tpu.memory_space<vmem>>, %arg13: memref<32x16xf32, #tpu.memory_space<vmem>>, %arg14: memref<16x1xf32, #tpu.memory_space<vmem>>, %arg15: memref<16x1xf32, #tpu.memory_space<vmem>>, %arg16: memref<1x16x128xf32, #tpu.memory_space<vmem>>) attributes {dimension_semantics = [#tpu.dimension_semantics<parallel>], iteration_bounds = array<i64: 2>, scalar_prefetch = 0 : i64, scratch_operands = 0 : i64, tpu.core_type = #tpu.core_type<tc>, window_params = [{transform_indices = @transform_0, window_bounds = array<i64: 1, 4, 128>}, {pipeline_mode = #tpu.pipeline_mode<synchronous>, transform_indices = @transform_1, window_bounds = array<i64: 24, 4>}, {pipeline_mode = #tpu.pipeline_mode<synchronous>, transform_indices = @transform_2, window_bounds = array<i64: 8, 1>}, {pipeline_mode = #tpu.pipeline_mode<synchronous>, transform_indices = @transform_3, window_bounds = array<i64: 16, 8>}, {pipeline_mode = #tpu.pipeline_mode<synchronous>, transform_indices = @transform_4, window_bounds = array<i64: 8, 1>}, {pipeline_mode = #tpu.pipeline_mode<synchronous>, transform_indices = @transform_5, window_bounds = array<i64: 8, 1>}, {pipeline_mode = #tpu.pipeline_mode<synchronous>, transform_indices = @transform_6, window_bounds = array<i64: 16, 8>}, {pipeline_mode = #tpu.pipeline_mode<synchronous>, transform_indices = @transform_7, window_bounds = array<i64: 8, 1>}, {pipeline_mode = #tpu.pipeline_mode<synchronous>, transform_indices = @transform_8, window_bounds = array<i64: 16, 8>}, {pipeline_mode = #tpu.pipeline_mode<synchronous>, transform_indices = @transform_9, window_bounds = array<i64: 8, 1>}, {pipeline_mode = #tpu.pipeline_mode<synchronous>, transform_indices = @transform_10, window_bounds = array<i64: 48, 8>}, {pipeline_mode = #tpu.pipeline_mode<synchronous>, transform_indices = @transform_11, window_bounds = array<i64: 16, 1>}, {pipeline_mode = #tpu.pipeline_mode<synchronous>, transform_indices = @transform_12, window_bounds = array<i64: 32, 16>}, {pipeline_mode = #tpu.pipeline_mode<synchronous>, transform_indices = @transform_13, window_bounds = array<i64: 16, 1>}, {pipeline_mode = #tpu.pipeline_mode<synchronous>, transform_indices = @transform_14, window_bounds = array<i64: 16, 1>}, {transform_indices = @transform_15, window_bounds = array<i64: 1, 16, 128>}]} {
    %c0 = arith.constant 0 : index
    %c0_0 = arith.constant 0 : index
    %c0_1 = arith.constant 0 : index
    %0 = vector.load %arg1[%c0, %c0_0, %c0_1] : memref<1x4x128xf32, #tpu.memory_space<vmem>>, vector<1x4x128xf32>
    %1 = vector.shape_cast %0 : vector<1x4x128xf32> to vector<4x128xf32>
    %2 = tpu.iota {dimensions = array<i32: 1>} : vector<1x128xi32>
    %c1_i32 = arith.constant 1 : i32
    %3 = vector.broadcast %c1_i32 : i32 to vector<1x128xi32>
    %4 = arith.cmpi slt, %2, %3 : vector<1x128xi32>
    %c2_i32 = arith.constant 2 : i32
    %5 = vector.broadcast %c2_i32 : i32 to vector<1x128xi32>
    %6 = arith.cmpi slt, %2, %5 : vector<1x128xi32>
    %c4_i32 = arith.constant 4 : i32
    %7 = vector.broadcast %c4_i32 : i32 to vector<1x128xi32>
    %8 = arith.cmpi slt, %2, %7 : vector<1x128xi32>
    %c0_2 = arith.constant 0 : index
    %c0_3 = arith.constant 0 : index
    %9 = vector.load %arg2[%c0_2, %c0_3] : memref<24x4xf32, #tpu.memory_space<vmem>>, vector<24x4xf32>
    %c0_4 = arith.constant 0 : index
    %c0_5 = arith.constant 0 : index
    %10 = vector.load %arg3[%c0_4, %c0_5] : memref<8x1xf32, #tpu.memory_space<vmem>>, vector<8x1xf32>
    %c0_6 = arith.constant 0 : index
    %c0_7 = arith.constant 0 : index
    %11 = vector.load %arg4[%c0_6, %c0_7] : memref<16x8xf32, #tpu.memory_space<vmem>>, vector<16x8xf32>
    %c0_8 = arith.constant 0 : index
    %c0_9 = arith.constant 0 : index
    %12 = vector.load %arg5[%c0_8, %c0_9] : memref<8x1xf32, #tpu.memory_space<vmem>>, vector<8x1xf32>
    %c0_10 = arith.constant 0 : index
    %c0_11 = arith.constant 0 : index
    %13 = vector.load %arg6[%c0_10, %c0_11] : memref<8x1xf32, #tpu.memory_space<vmem>>, vector<8x1xf32>
    %cst = arith.constant dense<0.000000e+00> : vector<24x128xf32>
    %14 = tpu.matmul %9, %1, %cst {dimension_numbers = #tpu.dot_dimension_numbers<[1], [0], [0], [1], [0, 0, 1, 1], [], []>} : vector<24x4xf32>, vector<4x128xf32>, vector<24x128xf32> -> vector<24x128xf32>
    %15 = vector.extract_strided_slice %14 {offsets = [0, 0], sizes = [8, 128], strides = [1, 1]} : vector<24x128xf32> to vector<8x128xf32>
    %c1_i32_12 = arith.constant 1 : i32
    %16 = tpu.dynamic_rotate %15 by %c1_i32_12 dim 1 : vector<8x128xf32>, i32 -> vector<8x128xf32>
    %cst_13 = arith.constant 0.000000e+00 : f32
    %17 = vector.shape_cast %4 : vector<1x128xi1> to vector<1x128xi1>
    %18 = vector.broadcast %17 : vector<1x128xi1> to vector<8x128xi1>
    %19 = vector.broadcast %cst_13 : f32 to vector<8x128xf32>
    %20 = arith.select %18, %19, %16 : vector<8x128xi1>, vector<8x128xf32>
    %21 = vector.extract_strided_slice %14 {offsets = [8, 0], sizes = [8, 128], strides = [1, 1]} : vector<24x128xf32> to vector<8x128xf32>
    %22 = arith.addf %20, %21 : vector<8x128xf32>
    %23 = vector.broadcast %10 : vector<8x1xf32> to vector<8x128xf32>
    %24 = arith.addf %22, %23 : vector<8x128xf32>
    %cst_14 = arith.constant 0.000000e+00 : f32
    %25 = vector.broadcast %cst_14 : f32 to vector<8x128xf32>
    %26 = arith.maximumf %24, %25 : vector<8x128xf32>
    %cst_15 = arith.constant dense<0.000000e+00> : vector<16x128xf32>
    %27 = tpu.matmul %11, %26, %cst_15 {dimension_numbers = #tpu.dot_dimension_numbers<[1], [0], [0], [1], [0, 0, 1, 1], [], []>} : vector<16x8xf32>, vector<8x128xf32>, vector<16x128xf32> -> vector<16x128xf32>
    %28 = vector.extract_strided_slice %27 {offsets = [0, 0], sizes = [8, 128], strides = [1, 1]} : vector<16x128xf32> to vector<8x128xf32>
    %c1_i32_16 = arith.constant 1 : i32
    %29 = tpu.dynamic_rotate %28 by %c1_i32_16 dim 1 : vector<8x128xf32>, i32 -> vector<8x128xf32>
    %cst_17 = arith.constant 0.000000e+00 : f32
    %30 = vector.shape_cast %4 : vector<1x128xi1> to vector<1x128xi1>
    %31 = vector.broadcast %30 : vector<1x128xi1> to vector<8x128xi1>
    %32 = vector.broadcast %cst_17 : f32 to vector<8x128xf32>
    %33 = arith.select %31, %32, %29 : vector<8x128xi1>, vector<8x128xf32>
    %34 = vector.extract_strided_slice %27 {offsets = [8, 0], sizes = [8, 128], strides = [1, 1]} : vector<16x128xf32> to vector<8x128xf32>
    %35 = arith.addf %33, %34 : vector<8x128xf32>
    %36 = vector.broadcast %12 : vector<8x1xf32> to vector<8x128xf32>
    %37 = arith.addf %35, %36 : vector<8x128xf32>
    %cst_18 = arith.constant 0.000000e+00 : f32
    %38 = vector.broadcast %cst_18 : f32 to vector<8x128xf32>
    %39 = arith.maximumf %37, %38 : vector<8x128xf32>
    %40 = vector.extract_strided_slice %14 {offsets = [16, 0], sizes = [8, 128], strides = [1, 1]} : vector<24x128xf32> to vector<8x128xf32>
    %41 = vector.broadcast %13 : vector<8x1xf32> to vector<8x128xf32>
    %42 = arith.addf %40, %41 : vector<8x128xf32>
    %43 = arith.addf %39, %42 : vector<8x128xf32>
    %cst_19 = arith.constant 0.000000e+00 : f32
    %44 = vector.broadcast %cst_19 : f32 to vector<8x128xf32>
    %45 = arith.maximumf %43, %44 : vector<8x128xf32>
    %c0_20 = arith.constant 0 : index
    %c0_21 = arith.constant 0 : index
    %46 = vector.load %arg7[%c0_20, %c0_21] : memref<16x8xf32, #tpu.memory_space<vmem>>, vector<16x8xf32>
    %c0_22 = arith.constant 0 : index
    %c0_23 = arith.constant 0 : index
    %47 = vector.load %arg8[%c0_22, %c0_23] : memref<8x1xf32, #tpu.memory_space<vmem>>, vector<8x1xf32>
    %c0_24 = arith.constant 0 : index
    %c0_25 = arith.constant 0 : index
    %48 = vector.load %arg9[%c0_24, %c0_25] : memref<16x8xf32, #tpu.memory_space<vmem>>, vector<16x8xf32>
    %c0_26 = arith.constant 0 : index
    %c0_27 = arith.constant 0 : index
    %49 = vector.load %arg10[%c0_26, %c0_27] : memref<8x1xf32, #tpu.memory_space<vmem>>, vector<8x1xf32>
    %cst_28 = arith.constant dense<0.000000e+00> : vector<16x128xf32>
    %50 = tpu.matmul %46, %45, %cst_28 {dimension_numbers = #tpu.dot_dimension_numbers<[1], [0], [0], [1], [0, 0, 1, 1], [], []>} : vector<16x8xf32>, vector<8x128xf32>, vector<16x128xf32> -> vector<16x128xf32>
    %51 = vector.extract_strided_slice %50 {offsets = [0, 0], sizes = [8, 128], strides = [1, 1]} : vector<16x128xf32> to vector<8x128xf32>
    %c2_i32_29 = arith.constant 2 : i32
    %52 = tpu.dynamic_rotate %51 by %c2_i32_29 dim 1 : vector<8x128xf32>, i32 -> vector<8x128xf32>
    %cst_30 = arith.constant 0.000000e+00 : f32
    %53 = vector.shape_cast %6 : vector<1x128xi1> to vector<1x128xi1>
    %54 = vector.broadcast %53 : vector<1x128xi1> to vector<8x128xi1>
    %55 = vector.broadcast %cst_30 : f32 to vector<8x128xf32>
    %56 = arith.select %54, %55, %52 : vector<8x128xi1>, vector<8x128xf32>
    %57 = vector.extract_strided_slice %50 {offsets = [8, 0], sizes = [8, 128], strides = [1, 1]} : vector<16x128xf32> to vector<8x128xf32>
    %58 = arith.addf %56, %57 : vector<8x128xf32>
    %59 = vector.broadcast %47 : vector<8x1xf32> to vector<8x128xf32>
    %60 = arith.addf %58, %59 : vector<8x128xf32>
    %cst_31 = arith.constant 0.000000e+00 : f32
    %61 = vector.broadcast %cst_31 : f32 to vector<8x128xf32>
    %62 = arith.maximumf %60, %61 : vector<8x128xf32>
    %cst_32 = arith.constant dense<0.000000e+00> : vector<16x128xf32>
    %63 = tpu.matmul %48, %62, %cst_32 {dimension_numbers = #tpu.dot_dimension_numbers<[1], [0], [0], [1], [0, 0, 1, 1], [], []>} : vector<16x8xf32>, vector<8x128xf32>, vector<16x128xf32> -> vector<16x128xf32>
    %64 = vector.extract_strided_slice %63 {offsets = [0, 0], sizes = [8, 128], strides = [1, 1]} : vector<16x128xf32> to vector<8x128xf32>
    %c2_i32_33 = arith.constant 2 : i32
    %65 = tpu.dynamic_rotate %64 by %c2_i32_33 dim 1 : vector<8x128xf32>, i32 -> vector<8x128xf32>
    %cst_34 = arith.constant 0.000000e+00 : f32
    %66 = vector.shape_cast %6 : vector<1x128xi1> to vector<1x128xi1>
    %67 = vector.broadcast %66 : vector<1x128xi1> to vector<8x128xi1>
    %68 = vector.broadcast %cst_34 : f32 to vector<8x128xf32>
    %69 = arith.select %67, %68, %65 : vector<8x128xi1>, vector<8x128xf32>
    %70 = vector.extract_strided_slice %63 {offsets = [8, 0], sizes = [8, 128], strides = [1, 1]} : vector<16x128xf32> to vector<8x128xf32>
    %71 = arith.addf %69, %70 : vector<8x128xf32>
    %72 = vector.broadcast %49 : vector<8x1xf32> to vector<8x128xf32>
    %73 = arith.addf %71, %72 : vector<8x128xf32>
    %cst_35 = arith.constant 0.000000e+00 : f32
    %74 = vector.broadcast %cst_35 : f32 to vector<8x128xf32>
    %75 = arith.maximumf %73, %74 : vector<8x128xf32>
    %76 = arith.addf %75, %45 : vector<8x128xf32>
    %cst_36 = arith.constant 0.000000e+00 : f32
    %77 = vector.broadcast %cst_36 : f32 to vector<8x128xf32>
    %78 = arith.maximumf %76, %77 : vector<8x128xf32>
    %c0_37 = arith.constant 0 : index
    %c0_38 = arith.constant 0 : index
    %79 = vector.load %arg11[%c0_37, %c0_38] : memref<48x8xf32, #tpu.memory_space<vmem>>, vector<48x8xf32>
    %c0_39 = arith.constant 0 : index
    %c0_40 = arith.constant 0 : index
    %80 = vector.load %arg12[%c0_39, %c0_40] : memref<16x1xf32, #tpu.memory_space<vmem>>, vector<16x1xf32>
    %c0_41 = arith.constant 0 : index
    %c0_42 = arith.constant 0 : index
    %81 = vector.load %arg13[%c0_41, %c0_42] : memref<32x16xf32, #tpu.memory_space<vmem>>, vector<32x16xf32>
    %c0_43 = arith.constant 0 : index
    %c0_44 = arith.constant 0 : index
    %82 = vector.load %arg14[%c0_43, %c0_44] : memref<16x1xf32, #tpu.memory_space<vmem>>, vector<16x1xf32>
    %c0_45 = arith.constant 0 : index
    %c0_46 = arith.constant 0 : index
    %83 = vector.load %arg15[%c0_45, %c0_46] : memref<16x1xf32, #tpu.memory_space<vmem>>, vector<16x1xf32>
    %cst_47 = arith.constant dense<0.000000e+00> : vector<48x128xf32>
    %84 = tpu.matmul %79, %78, %cst_47 {dimension_numbers = #tpu.dot_dimension_numbers<[1], [0], [0], [1], [0, 0, 1, 1], [], []>} : vector<48x8xf32>, vector<8x128xf32>, vector<48x128xf32> -> vector<48x128xf32>
    %85 = vector.extract_strided_slice %84 {offsets = [0, 0], sizes = [16, 128], strides = [1, 1]} : vector<48x128xf32> to vector<16x128xf32>
    %c4_i32_48 = arith.constant 4 : i32
    %86 = tpu.dynamic_rotate %85 by %c4_i32_48 dim 1 : vector<16x128xf32>, i32 -> vector<16x128xf32>
    %cst_49 = arith.constant 0.000000e+00 : f32
    %87 = vector.shape_cast %8 : vector<1x128xi1> to vector<1x128xi1>
    %88 = vector.broadcast %87 : vector<1x128xi1> to vector<16x128xi1>
    %89 = vector.broadcast %cst_49 : f32 to vector<16x128xf32>
    %90 = arith.select %88, %89, %86 : vector<16x128xi1>, vector<16x128xf32>
    %91 = vector.extract_strided_slice %84 {offsets = [16, 0], sizes = [16, 128], strides = [1, 1]} : vector<48x128xf32> to vector<16x128xf32>
    %92 = arith.addf %90, %91 : vector<16x128xf32>
    %93 = vector.broadcast %80 : vector<16x1xf32> to vector<16x128xf32>
    %94 = arith.addf %92, %93 : vector<16x128xf32>
    %cst_50 = arith.constant 0.000000e+00 : f32
    %95 = vector.broadcast %cst_50 : f32 to vector<16x128xf32>
    %96 = arith.maximumf %94, %95 : vector<16x128xf32>
    %cst_51 = arith.constant dense<0.000000e+00> : vector<32x128xf32>
    %97 = tpu.matmul %81, %96, %cst_51 {dimension_numbers = #tpu.dot_dimension_numbers<[1], [0], [0], [1], [0, 0, 1, 1], [], []>} : vector<32x16xf32>, vector<16x128xf32>, vector<32x128xf32> -> vector<32x128xf32>
    %98 = vector.extract_strided_slice %97 {offsets = [0, 0], sizes = [16, 128], strides = [1, 1]} : vector<32x128xf32> to vector<16x128xf32>
    %c4_i32_52 = arith.constant 4 : i32
    %99 = tpu.dynamic_rotate %98 by %c4_i32_52 dim 1 : vector<16x128xf32>, i32 -> vector<16x128xf32>
    %cst_53 = arith.constant 0.000000e+00 : f32
    %100 = vector.shape_cast %8 : vector<1x128xi1> to vector<1x128xi1>
    %101 = vector.broadcast %100 : vector<1x128xi1> to vector<16x128xi1>
    %102 = vector.broadcast %cst_53 : f32 to vector<16x128xf32>
    %103 = arith.select %101, %102, %99 : vector<16x128xi1>, vector<16x128xf32>
    %104 = vector.extract_strided_slice %97 {offsets = [16, 0], sizes = [16, 128], strides = [1, 1]} : vector<32x128xf32> to vector<16x128xf32>
    %105 = arith.addf %103, %104 : vector<16x128xf32>
    %106 = vector.broadcast %82 : vector<16x1xf32> to vector<16x128xf32>
    %107 = arith.addf %105, %106 : vector<16x128xf32>
    %cst_54 = arith.constant 0.000000e+00 : f32
    %108 = vector.broadcast %cst_54 : f32 to vector<16x128xf32>
    %109 = arith.maximumf %107, %108 : vector<16x128xf32>
    %110 = vector.extract_strided_slice %84 {offsets = [32, 0], sizes = [16, 128], strides = [1, 1]} : vector<48x128xf32> to vector<16x128xf32>
    %111 = vector.broadcast %83 : vector<16x1xf32> to vector<16x128xf32>
    %112 = arith.addf %110, %111 : vector<16x128xf32>
    %113 = arith.addf %109, %112 : vector<16x128xf32>
    %cst_55 = arith.constant 0.000000e+00 : f32
    %114 = vector.broadcast %cst_55 : f32 to vector<16x128xf32>
    %115 = arith.maximumf %113, %114 : vector<16x128xf32>
    %c0_56 = arith.constant 0 : index
    %c0_57 = arith.constant 0 : index
    %c0_58 = arith.constant 0 : index
    %116 = vector.load %arg16[%c0_56, %c0_57, %c0_58] : memref<1x16x128xf32, #tpu.memory_space<vmem>>, vector<1x16x128xf32>
    %117 = vector.shape_cast %116 : vector<1x16x128xf32> to vector<16x128xf32>
    %118 = vector.shape_cast %115 : vector<16x128xf32> to vector<1x16x128xf32>
    tpu.vector_store %arg16[%c0_56, %c0_57, %c0_58], %118 {strides = array<i32>} : memref<1x16x128xf32, #tpu.memory_space<vmem>>, vector<1x16x128xf32>,
    return
  }
  func.func @transform_0(%arg0: i32) -> (i32, i32, i32) {
    %c0_i32 = arith.constant 0 : i32
    %c0_i32_0 = arith.constant 0 : i32
    %c0_i32_1 = arith.constant 0 : i32
    return %arg0, %c0_i32, %c0_i32_0 : i32, i32, i32
  }
  func.func @transform_1(%arg0: i32) -> (i32, i32) {
    %c0_i32 = arith.constant 0 : i32
    %c0_i32_0 = arith.constant 0 : i32
    %c0_i32_1 = arith.constant 0 : i32
    return %c0_i32, %c0_i32_0 : i32, i32
  }
  func.func @transform_2(%arg0: i32) -> (i32, i32) {
    %c0_i32 = arith.constant 0 : i32
    %c0_i32_0 = arith.constant 0 : i32
    %c0_i32_1 = arith.constant 0 : i32
    return %c0_i32, %c0_i32_0 : i32, i32
  }
  func.func @transform_3(%arg0: i32) -> (i32, i32) {
    %c0_i32 = arith.constant 0 : i32
    %c0_i32_0 = arith.constant 0 : i32
    %c0_i32_1 = arith.constant 0 : i32
    return %c0_i32, %c0_i32_0 : i32, i32
  }
  func.func @transform_4(%arg0: i32) -> (i32, i32) {
    %c0_i32 = arith.constant 0 : i32
    %c0_i32_0 = arith.constant 0 : i32
    %c0_i32_1 = arith.constant 0 : i32
    return %c0_i32, %c0_i32_0 : i32, i32
  }
  func.func @transform_5(%arg0: i32) -> (i32, i32) {
    %c0_i32 = arith.constant 0 : i32
    %c0_i32_0 = arith.constant 0 : i32
    %c0_i32_1 = arith.constant 0 : i32
    return %c0_i32, %c0_i32_0 : i32, i32
  }
  func.func @transform_6(%arg0: i32) -> (i32, i32) {
    %c0_i32 = arith.constant 0 : i32
    %c0_i32_0 = arith.constant 0 : i32
    %c0_i32_1 = arith.constant 0 : i32
    return %c0_i32, %c0_i32_0 : i32, i32
  }
  func.func @transform_7(%arg0: i32) -> (i32, i32) {
    %c0_i32 = arith.constant 0 : i32
    %c0_i32_0 = arith.constant 0 : i32
    %c0_i32_1 = arith.constant 0 : i32
    return %c0_i32, %c0_i32_0 : i32, i32
  }
  func.func @transform_8(%arg0: i32) -> (i32, i32) {
    %c0_i32 = arith.constant 0 : i32
    %c0_i32_0 = arith.constant 0 : i32
    %c0_i32_1 = arith.constant 0 : i32
    return %c0_i32, %c0_i32_0 : i32, i32
  }
  func.func @transform_9(%arg0: i32) -> (i32, i32) {
    %c0_i32 = arith.constant 0 : i32
    %c0_i32_0 = arith.constant 0 : i32
    %c0_i32_1 = arith.constant 0 : i32
    return %c0_i32, %c0_i32_0 : i32, i32
  }
  func.func @transform_10(%arg0: i32) -> (i32, i32) {
    %c0_i32 = arith.constant 0 : i32
    %c0_i32_0 = arith.constant 0 : i32
    %c0_i32_1 = arith.constant 0 : i32
    return %c0_i32, %c0_i32_0 : i32, i32
  }
  func.func @transform_11(%arg0: i32) -> (i32, i32) {
    %c0_i32 = arith.constant 0 : i32
    %c0_i32_0 = arith.constant 0 : i32
    %c0_i32_1 = arith.constant 0 : i32
    return %c0_i32, %c0_i32_0 : i32, i32
  }
  func.func @transform_12(%arg0: i32) -> (i32, i32) {
    %c0_i32 = arith.constant 0 : i32
    %c0_i32_0 = arith.constant 0 : i32
    %c0_i32_1 = arith.constant 0 : i32
    return %c0_i32, %c0_i32_0 : i32, i32
  }
  func.func @transform_13(%arg0: i32) -> (i32, i32) {
    %c0_i32 = arith.constant 0 : i32
    %c0_i32_0 = arith.constant 0 : i32
    %c0_i32_1 = arith.constant 0 : i32
    return %c0_i32, %c0_i32_0 : i32, i32
  }
  func.func @transform_14(%arg0: i32) -> (i32, i32) {
    %c0_i32 = arith.constant 0 : i32
    %c0_i32_0 = arith.constant 0 : i32
    %c0_i32_1 = arith.constant 0 : i32
    return %c0_i32, %c0_i32_0 : i32, i32
  }
  func.func @transform_15(%arg0: i32) -> (i32, i32, i32) {
    %c0_i32 = arith.constant 0 : i32
    %c0_i32_0 = arith.constant 0 : i32
    %c0_i32_1 = arith.constant 0 : i32
    return %arg0, %c0_i32, %c0_i32_0 : i32, i32, i32
  }
}

</mosaic_0001>

<llo_original>
// kernel: tpu_custom_call.1
$region0: #{tpu_custom_call.1}
  #allocation0 [shape = 'u32[]', space=smem, size = 0x4, offset = 0x4, fixed_abs, tag = 'smem constant byte address 0x4 - core index']
  #allocation1 [shape = 'u32[144,128]{1,0:T(1,128)}', space=vmem, size = 0x12000, scoped, tag = 'internal scratch']
  %s0 = inlined_call_operand.hbm [shape: f32[2,4,128], index: 0, kind: input, shape index: {}]
  %s1 = inlined_call_operand.hbm [shape: f32[24,4], index: 1, kind: input, shape index: {}]
  %s2 = inlined_call_operand.hbm [shape: f32[8,1], index: 2, kind: input, shape index: {}]
  %s3 = inlined_call_operand.hbm [shape: f32[16,8], index: 3, kind: input, shape index: {}]
  %s4 = inlined_call_operand.hbm [shape: f32[8,1], index: 4, kind: input, shape index: {}]
  %s5 = inlined_call_operand.hbm [shape: f32[8,1], index: 5, kind: input, shape index: {}]
  %s6 = inlined_call_operand.hbm [shape: f32[16,8], index: 6, kind: input, shape index: {}]
  %s7 = inlined_call_operand.hbm [shape: f32[8,1], index: 7, kind: input, shape index: {}]
  %s8 = inlined_call_operand.hbm [shape: f32[16,8], index: 8, kind: input, shape index: {}]
  %s9 = inlined_call_operand.hbm [shape: f32[8,1], index: 9, kind: input, shape index: {}]
  %s10 = inlined_call_operand.hbm [shape: f32[48,8], index: 10, kind: input, shape index: {}]
  %s11 = inlined_call_operand.hbm [shape: f32[16,1], index: 11, kind: input, shape index: {}]
  %s12 = inlined_call_operand.hbm [shape: f32[32,16], index: 12, kind: input, shape index: {}]
  %s13 = inlined_call_operand.hbm [shape: f32[16,1], index: 13, kind: input, shape index: {}]
  %s14 = inlined_call_operand.hbm [shape: f32[16,1], index: 14, kind: input, shape index: {}]
  %s15 = inlined_call_operand.hbm [shape: f32[2,16,128], index: 15, kind: output, shape index: {}]
  %s16 = sld [smem:[#allocation0]]
  $region153: #{tpu_custom_call.1} parent=0
    _
  %s18 = ssub.s32 1, %s16
  %s19 = scalar_select 0, %s18, %s16
  $region1: #{tpu_custom_call.1} parent=0
    #allocation2 [shape = 'u8[4096]{0}', space=vmem, size = 0x1000, scoped, tag = 'input window, operand 0']
    #allocation3 [shape = 's32[2]{0}', space=sflag, size = 0x8, scoped, tag = 'scoped memory for tpu_custom_call.1']
    #allocation4 [shape = 's32[2]{0}', space=sflag, size = 0x8, scoped, tag = 'scoped memory for tpu_custom_call.1']
    #allocation5 [shape = 'u8[12288]{0}', space=vmem, size = 0x3000, scoped, tag = 'input window, operand 1, single buffered']
    #allocation6 [shape = 's32[1]{0}', space=sflag, size = 0x4, scoped, tag = 'scoped memory for tpu_custom_call.1']
    #allocation7 [shape = 'u8[4096]{0}', space=vmem, size = 0x1000, scoped, tag = 'input window, operand 2, single buffered']
    #allocation8 [shape = 'u8[8192]{0}', space=vmem, size = 0x2000, scoped, tag = 'input window, operand 3, single buffered']
    #allocation9 [shape = 's32[1]{0}', space=sflag, size = 0x4, scoped, tag = 'scoped memory for tpu_custom_call.1']
    #allocation10 [shape = 'u8[4096]{0}', space=vmem, size = 0x1000, scoped, tag = 'input window, operand 4, single buffered']
    #allocation11 [shape = 'u8[4096]{0}', space=vmem, size = 0x1000, scoped, tag = 'input window, operand 5, single buffered']
    #allocation12 [shape = 's32[1]{0}', space=sflag, size = 0x4, scoped, tag = 'scoped memory for tpu_custom_call.1']
    #allocation13 [shape = 'u8[8192]{0}', space=vmem, size = 0x2000, scoped, tag = 'input window, operand 6, single buffered']
    #allocation14 [shape = 'u8[4096]{0}', space=vmem, size = 0x1000, scoped, tag = 'input window, operand 7, single buffered']
    #allocation15 [shape = 's32[1]{0}', space=sflag, size = 0x4, scoped, tag = 'scoped memory for tpu_custom_call.1']
    #allocation16 [shape = 'u8[8192]{0}', space=vmem, size = 0x2000, scoped, tag = 'input window, operand 8, single buffered']
    #allocation17 [shape = 'u8[4096]{0}', space=vmem, size = 0x1000, scoped, tag = 'input window, operand 9, single buffered']
    #allocation18 [shape = 's32[1]{0}', space=sflag, size = 0x4, scoped, tag = 'scoped memory for tpu_custom_call.1']
    #allocation19 [shape = 'u8[24576]{0}', space=vmem, size = 0x6000, scoped, tag = 'input window, operand 10, single buffered']
    #allocation20 [shape = 'u8[8192]{0}', space=vmem, size = 0x2000, scoped, tag = 'input window, operand 11, single buffered']
    #allocation21 [shape = 's32[1]{0}', space=sflag, size = 0x4, scoped, tag = 'scoped memory for tpu_custom_call.1']
    #allocation22 [shape = 'u8[16384]{0}', space=vmem, size = 0x4000, scoped, tag = 'input window, operand 12, single buffered']
    #allocation23 [shape = 'u8[8192]{0}', space=vmem, size = 0x2000, scoped, tag = 'input window, operand 13, single buffered']
    #allocation24 [shape = 's32[1]{0}', space=sflag, size = 0x4, scoped, tag = 'scoped memory for tpu_custom_call.1']
    #allocation25 [shape = 'u8[8192]{0}', space=vmem, size = 0x2000, scoped, tag = 'input window, operand 14, single buffered']
    #allocation26 [shape = 'u8[16384]{0}', space=vmem, size = 0x4000, scoped, tag = 'output window, operand 0']
    %20 = vsyncpa [#allocation3], 0
    %s21 = scalar_lea.sflag [#allocation3], 1
    %22 = vsyncpa %s21, 0
    %23 = vsyncpa [#allocation6], 0
    %24 = vsyncpa [#allocation9], 0
    %25 = vsyncpa [#allocation12], 0
    %26 = vsyncpa [#allocation15], 0
    %27 = vsyncpa [#allocation18], 0
    %28 = vsyncpa [#allocation21], 0
    %29 = vsyncpa [#allocation24], 0
    %30 = vsyncpa [#allocation4], 0
    %s31 = scalar_lea.sflag [#allocation4], 1
    %32 = vsyncpa %s31, 0
    loop: start=0, step=1, limit=4
    $region2: #{tpu_custom_call.1} parent=1 // loop_pre_header
      _
    $region3: #{tpu_custom_call.1} parent=1 // loop_header
      %s34 = sphi 0, %s38
      %p35 = scmp.ge.s32.totalorder %s34, 4
      %s44 = sphi 0, %s46
      %s47 = sphi 0, %s44
      %s48 = sphi 0, %s47
      %s64 = sphi 0, %s48
      %s68 = sphi 0, %s68
      %s70 = sphi 0, %s68
      %s71 = sphi 0, %s70
      %s85 = sphi 0, %s71
      %s89 = sphi 0, %s89
      %s91 = sphi 0, %s89
      %s92 = sphi 0, %s91
      %s106 = sphi 0, %s92
      %s110 = sphi 0, %s110
      %s112 = sphi 0, %s110
      %s113 = sphi 0, %s112
      %s127 = sphi 0, %s113
      %s131 = sphi 0, %s131
      %s133 = sphi 0, %s131
      %s134 = sphi 0, %s133
      %s148 = sphi 0, %s134
      %s152 = sphi 0, %s152
      %s154 = sphi 0, %s152
      %s155 = sphi 0, %s154
      %s169 = sphi 0, %s155
      %s173 = sphi 0, %s173
      %s175 = sphi 0, %s173
      %s176 = sphi 0, %s175
      %s190 = sphi 0, %s176
      %s194 = sphi 0, %s194
      %s196 = sphi 0, %s194
      %s197 = sphi 0, %s196
      %s211 = sphi 0, %s197
      %s215 = sphi 0, %s215
      %s217 = sphi 0, %s215
      %s218 = sphi 0, %s217
      %s232 = sphi 0, %s218
      %s236 = sphi 0, %s236
      %s238 = sphi 0, %s236
      %s239 = sphi 0, %s238
      %s253 = sphi 0, %s239
      %s257 = sphi 0, %s257
      %s259 = sphi 0, %s257
      %s260 = sphi 0, %s259
      %s274 = sphi 0, %s260
      %s278 = sphi 0, %s278
      %s280 = sphi 0, %s278
      %s281 = sphi 0, %s280
      %s295 = sphi 0, %s281
      %s299 = sphi 0, %s299
      %s301 = sphi 0, %s299
      %s302 = sphi 0, %s301
      %s316 = sphi 0, %s302
      %s320 = sphi 0, %s320
      %s322 = sphi 0, %s320
      %s323 = sphi 0, %s322
      %s337 = sphi 0, %s323
      %s341 = sphi 0, %s341
      %s343 = sphi 0, %s341
      %s344 = sphi 0, %s343
      %s358 = sphi 0, %s344
      %s364 = sphi 0, %s366
      %s367 = sphi 0, %s364
      %s368 = sphi 0, %s367
      %s384 = sphi 0, %s368
    $region4: #{tpu_custom_call.1} parent=1 // loop_header_branch
      %37 = sbr.rel (%p35) target = $region8
    $region5: #{tpu_custom_call.1} parent=1 // loop_body
      %s39 = ssub.s32 %s34, 1
      %s40 = ssub.s32 %s34, 2
      %s41 = sadd.s32 %s34, 1
      %s42 = ssub.s32 %s34, %s41
      %p43 = scmp.eq.s32.totalorder %s42, 0
      %s45 = sadd.s32 %s44, 1
      %s46 = scalar_select %p43, %s44, %s45
      %p49 = pneg %p43
      %p50 = scmp.eq.s32.totalorder %s34, 1
      %p51 = por %p49, %p50
      %p52 = scmp.ne.s32.totalorder %s44, %s47
      %p53 = scmp.eq.s32.totalorder %s34, 0
      %p54 = por %p52, %p53
      %p55 = scmp.ne.s32.totalorder %s44, %s47
      %p56 = scmp.eq.s32.totalorder %s39, 1
      %p57 = por %p55, %p56
      %p58 = scmp.ne.s32.totalorder %s47, %s48
      %p59 = scmp.eq.s32.totalorder %s39, 0
      %p60 = por %p58, %p59
      %p61 = scmp.ne.s32.totalorder %s47, %s48
      %p62 = scmp.eq.s32.totalorder %s40, 1
      %p63 = por %p61, %p62
      %p65 = scmp.ne.s32.totalorder %s48, %s64
      %p66 = scmp.eq.s32.totalorder %s40, 0
      %p67 = por %p65, %p66
      %s69 = sadd.s32 %s68, 1
      %p72 = scmp.eq.s32.totalorder %s34, 1
      %p73 = scmp.ne.s32.totalorder %s68, %s70
      %p74 = scmp.eq.s32.totalorder %s34, 0
      %p75 = por %p73, %p74
      %p76 = scmp.ne.s32.totalorder %s68, %s70
      %p77 = scmp.eq.s32.totalorder %s39, 1
      %p78 = por %p76, %p77
      %p79 = scmp.ne.s32.totalorder %s70, %s71
      %p80 = scmp.eq.s32.totalorder %s39, 0
      %p81 = por %p79, %p80
      %p82 = scmp.ne.s32.totalorder %s70, %s71
      %p83 = scmp.eq.s32.totalorder %s40, 1
      %p84 = por %p82, %p83
      %p86 = scmp.ne.s32.totalorder %s71, %s85
      %p87 = scmp.eq.s32.totalorder %s40, 0
      %p88 = por %p86, %p87
      %s90 = sadd.s32 %s89, 1
      %p93 = scmp.eq.s32.totalorder %s34, 1
      %p94 = scmp.ne.s32.totalorder %s89, %s91
      %p95 = scmp.eq.s32.totalorder %s34, 0
      %p96 = por %p94, %p95
      %p97 = scmp.ne.s32.totalorder %s89, %s91
      %p98 = scmp.eq.s32.totalorder %s39, 1
      %p99 = por %p97, %p98
      %p100 = scmp.ne.s32.totalorder %s91, %s92
      %p101 = scmp.eq.s32.totalorder %s39, 0
      %p102 = por %p100, %p101
      %p103 = scmp.ne.s32.totalorder %s91, %s92
      %p104 = scmp.eq.s32.totalorder %s40, 1
      %p105 = por %p103, %p104
      %p107 = scmp.ne.s32.totalorder %s92, %s106
      %p108 = scmp.eq.s32.totalorder %s40, 0
      %p109 = por %p107, %p108
      %s111 = sadd.s32 %s110, 1
      %p114 = scmp.eq.s32.totalorder %s34, 1
      %p115 = scmp.ne.s32.totalorder %s110, %s112
      %p116 = scmp.eq.s32.totalorder %s34, 0
      %p117 = por %p115, %p116
      %p118 = scmp.ne.s32.totalorder %s110, %s112
      %p119 = scmp.eq.s32.totalorder %s39, 1
      %p120 = por %p118, %p119
      %p121 = scmp.ne.s32.totalorder %s112, %s113
      %p122 = scmp.eq.s32.totalorder %s39, 0
      %p123 = por %p121, %p122
      %p124 = scmp.ne.s32.totalorder %s112, %s113
      %p125 = scmp.eq.s32.totalorder %s40, 1
      %p126 = por %p124, %p125
      %p128 = scmp.ne.s32.totalorder %s113, %s127
      %p129 = scmp.eq.s32.totalorder %s40, 0
      %p130 = por %p128, %p129
      %s132 = sadd.s32 %s131, 1
      %p135 = scmp.eq.s32.totalorder %s34, 1
      %p136 = scmp.ne.s32.totalorder %s131, %s133
      %p137 = scmp.eq.s32.totalorder %s34, 0
      %p138 = por %p136, %p137
      %p139 = scmp.ne.s32.totalorder %s131, %s133
      %p140 = scmp.eq.s32.totalorder %s39, 1
      %p141 = por %p139, %p140
      %p142 = scmp.ne.s32.totalorder %s133, %s134
      %p143 = scmp.eq.s32.totalorder %s39, 0
      %p144 = por %p142, %p143
      %p145 = scmp.ne.s32.totalorder %s133, %s134
      %p146 = scmp.eq.s32.totalorder %s40, 1
      %p147 = por %p145, %p146
      %p149 = scmp.ne.s32.totalorder %s134, %s148
      %p150 = scmp.eq.s32.totalorder %s40, 0
      %p151 = por %p149, %p150
      %s153 = sadd.s32 %s152, 1
      %p156 = scmp.eq.s32.totalorder %s34, 1
      %p157 = scmp.ne.s32.totalorder %s152, %s154
      %p158 = scmp.eq.s32.totalorder %s34, 0
      %p159 = por %p157, %p158
      %p160 = scmp.ne.s32.totalorder %s152, %s154
      %p161 = scmp.eq.s32.totalorder %s39, 1
      %p162 = por %p160, %p161
      %p163 = scmp.ne.s32.totalorder %s154, %s155
      %p164 = scmp.eq.s32.totalorder %s39, 0
      %p165 = por %p163, %p164
      %p166 = scmp.ne.s32.totalorder %s154, %s155
      %p167 = scmp.eq.s32.totalorder %s40, 1
      %p168 = por %p166, %p167
      %p170 = scmp.ne.s32.totalorder %s155, %s169
      %p171 = scmp.eq.s32.totalorder %s40, 0
      %p172 = por %p170, %p171
      %s174 = sadd.s32 %s173, 1
      %p177 = scmp.eq.s32.totalorder %s34, 1
      %p178 = scmp.ne.s32.totalorder %s173, %s175
      %p179 = scmp.eq.s32.totalorder %s34, 0
      %p180 = por %p178, %p179
      %p181 = scmp.ne.s32.totalorder %s173, %s175
      %p182 = scmp.eq.s32.totalorder %s39, 1
      %p183 = por %p181, %p182
      %p184 = scmp.ne.s32.totalorder %s175, %s176
      %p185 = scmp.eq.s32.totalorder %s39, 0
      %p186 = por %p184, %p185
      %p187 = scmp.ne.s32.totalorder %s175, %s176
      %p188 = scmp.eq.s32.totalorder %s40, 1
      %p189 = por %p187, %p188
      %p191 = scmp.ne.s32.totalorder %s176, %s190
      %p192 = scmp.eq.s32.totalorder %s40, 0
      %p193 = por %p191, %p192
      %s195 = sadd.s32 %s194, 1
      %p198 = scmp.eq.s32.totalorder %s34, 1
      %p199 = scmp.ne.s32.totalorder %s194, %s196
      %p200 = scmp.eq.s32.totalorder %s34, 0
      %p201 = por %p199, %p200
      %p202 = scmp.ne.s32.totalorder %s194, %s196
      %p203 = scmp.eq.s32.totalorder %s39, 1
      %p204 = por %p202, %p203
      %p205 = scmp.ne.s32.totalorder %s196, %s197
      %p206 = scmp.eq.s32.totalorder %s39, 0
      %p207 = por %p205, %p206
      %p208 = scmp.ne.s32.totalorder %s196, %s197
      %p209 = scmp.eq.s32.totalorder %s40, 1
      %p210 = por %p208, %p209
      %p212 = scmp.ne.s32.totalorder %s197, %s211
      %p213 = scmp.eq.s32.totalorder %s40, 0
      %p214 = por %p212, %p213
      %s216 = sadd.s32 %s215, 1
      %p219 = scmp.eq.s32.totalorder %s34, 1
      %p220 = scmp.ne.s32.totalorder %s215, %s217
      %p221 = scmp.eq.s32.totalorder %s34, 0
      %p222 = por %p220, %p221
      %p223 = scmp.ne.s32.totalorder %s215, %s217
      %p224 = scmp.eq.s32.totalorder %s39, 1
      %p225 = por %p223, %p224
      %p226 = scmp.ne.s32.totalorder %s217, %s218
      %p227 = scmp.eq.s32.totalorder %s39, 0
      %p228 = por %p226, %p227
      %p229 = scmp.ne.s32.totalorder %s217, %s218
      %p230 = scmp.eq.s32.totalorder %s40, 1
      %p231 = por %p229, %p230
      %p233 = scmp.ne.s32.totalorder %s218, %s232
      %p234 = scmp.eq.s32.totalorder %s40, 0
      %p235 = por %p233, %p234
      %s237 = sadd.s32 %s236, 1
      %p240 = scmp.eq.s32.totalorder %s34, 1
      %p241 = scmp.ne.s32.totalorder %s236, %s238
      %p242 = scmp.eq.s32.totalorder %s34, 0
      %p243 = por %p241, %p242
      %p244 = scmp.ne.s32.totalorder %s236, %s238
      %p245 = scmp.eq.s32.totalorder %s39, 1
      %p246 = por %p244, %p245
      %p247 = scmp.ne.s32.totalorder %s238, %s239
      %p248 = scmp.eq.s32.totalorder %s39, 0
      %p249 = por %p247, %p248
      %p250 = scmp.ne.s32.totalorder %s238, %s239
      %p251 = scmp.eq.s32.totalorder %s40, 1
      %p252 = por %p250, %p251
      %p254 = scmp.ne.s32.totalorder %s239, %s253
      %p255 = scmp.eq.s32.totalorder %s40, 0
      %p256 = por %p254, %p255
      %s258 = sadd.s32 %s257, 1
      %p261 = scmp.eq.s32.totalorder %s34, 1
      %p262 = scmp.ne.s32.totalorder %s257, %s259
      %p263 = scmp.eq.s32.totalorder %s34, 0
      %p264 = por %p262, %p263
      %p265 = scmp.ne.s32.totalorder %s257, %s259
      %p266 = scmp.eq.s32.totalorder %s39, 1
      %p267 = por %p265, %p266
      %p268 = scmp.ne.s32.totalorder %s259, %s260
      %p269 = scmp.eq.s32.totalorder %s39, 0
      %p270 = por %p268, %p269
      %p271 = scmp.ne.s32.totalorder %s259, %s260
      %p272 = scmp.eq.s32.totalorder %s40, 1
      %p273 = por %p271, %p272
      %p275 = scmp.ne.s32.totalorder %s260, %s274
      %p276 = scmp.eq.s32.totalorder %s40, 0
      %p277 = por %p275, %p276
      %s279 = sadd.s32 %s278, 1
      %p282 = scmp.eq.s32.totalorder %s34, 1
      %p283 = scmp.ne.s32.totalorder %s278, %s280
      %p284 = scmp.eq.s32.totalorder %s34, 0
      %p285 = por %p283, %p284
      %p286 = scmp.ne.s32.totalorder %s278, %s280
      %p287 = scmp.eq.s32.totalorder %s39, 1
      %p288 = por %p286, %p287
      %p289 = scmp.ne.s32.totalorder %s280, %s281
      %p290 = scmp.eq.s32.totalorder %s39, 0
      %p291 = por %p289, %p290
      %p292 = scmp.ne.s32.totalorder %s280, %s281
      %p293 = scmp.eq.s32.totalorder %s40, 1
      %p294 = por %p292, %p293
      %p296 = scmp.ne.s32.totalorder %s281, %s295
      %p297 = scmp.eq.s32.totalorder %s40, 0
      %p298 = por %p296, %p297
      %s300 = sadd.s32 %s299, 1
      %p303 = scmp.eq.s32.totalorder %s34, 1
      %p304 = scmp.ne.s32.totalorder %s299, %s301
      %p305 = scmp.eq.s32.totalorder %s34, 0
      %p306 = por %p304, %p305
      %p307 = scmp.ne.s32.totalorder %s299, %s301
      %p308 = scmp.eq.s32.totalorder %s39, 1
      %p309 = por %p307, %p308
      %p310 = scmp.ne.s32.totalorder %s301, %s302
      %p311 = scmp.eq.s32.totalorder %s39, 0
      %p312 = por %p310, %p311
      %p313 = scmp.ne.s32.totalorder %s301, %s302
      %p314 = scmp.eq.s32.totalorder %s40, 1
      %p315 = por %p313, %p314
      %p317 = scmp.ne.s32.totalorder %s302, %s316
      %p318 = scmp.eq.s32.totalorder %s40, 0
      %p319 = por %p317, %p318
      %s321 = sadd.s32 %s320, 1
      %p324 = scmp.eq.s32.totalorder %s34, 1
      %p325 = scmp.ne.s32.totalorder %s320, %s322
      %p326 = scmp.eq.s32.totalorder %s34, 0
      %p327 = por %p325, %p326
      %p328 = scmp.ne.s32.totalorder %s320, %s322
      %p329 = scmp.eq.s32.totalorder %s39, 1
      %p330 = por %p328, %p329
      %p331 = scmp.ne.s32.totalorder %s322, %s323
      %p332 = scmp.eq.s32.totalorder %s39, 0
      %p333 = por %p331, %p332
      %p334 = scmp.ne.s32.totalorder %s322, %s323
      %p335 = scmp.eq.s32.totalorder %s40, 1
      %p336 = por %p334, %p335
      %p338 = scmp.ne.s32.totalorder %s323, %s337
      %p339 = scmp.eq.s32.totalorder %s40, 0
      %p340 = por %p338, %p339
      %s342 = sadd.s32 %s341, 1
      %p345 = scmp.eq.s32.totalorder %s34, 1
      %p346 = scmp.ne.s32.totalorder %s341, %s343
      %p347 = scmp.eq.s32.totalorder %s34, 0
      %p348 = por %p346, %p347
      %p349 = scmp.ne.s32.totalorder %s341, %s343
      %p350 = scmp.eq.s32.totalorder %s39, 1
      %p351 = por %p349, %p350
      %p352 = scmp.ne.s32.totalorder %s343, %s344
      %p353 = scmp.eq.s32.totalorder %s39, 0
      %p354 = por %p352, %p353
      %p355 = scmp.ne.s32.totalorder %s343, %s344
      %p356 = scmp.eq.s32.totalorder %s40, 1
      %p357 = por %p355, %p356
      %p359 = scmp.ne.s32.totalorder %s344, %s358
      %p360 = scmp.eq.s32.totalorder %s40, 0
      %p361 = por %p359, %p360
      %s362 = ssub.s32 %s34, %s41
      %p363 = scmp.eq.s32.totalorder %s362, 0
      %s365 = sadd.s32 %s364, 1
      %s366 = scalar_select %p363, %s364, %s365
      %p369 = pneg %p363
      %p370 = scmp.eq.s32.totalorder %s34, 1
      %p371 = por %p369, %p370
      %p372 = scmp.ne.s32.totalorder %s364, %s367
      %p373 = scmp.eq.s32.totalorder %s34, 0
      %p374 = por %p372, %p373
      %p375 = scmp.ne.s32.totalorder %s364, %s367
      %p376 = scmp.eq.s32.totalorder %s39, 1
      %p377 = por %p375, %p376
      %p378 = scmp.ne.s32.totalorder %s367, %s368
      %p379 = scmp.eq.s32.totalorder %s39, 0
      %p380 = por %p378, %p379
      %p381 = scmp.ne.s32.totalorder %s367, %s368
      %p382 = scmp.eq.s32.totalorder %s40, 1
      %p383 = por %p381, %p382
      %p385 = scmp.ne.s32.totalorder %s368, %s384
      %p386 = scmp.eq.s32.totalorder %s40, 0
      %p387 = por %p385, %p386
      %p388 = scmp.le.s32.totalorder 1, %s34
      %p389 = scmp.lt.s32.totalorder %s34, 3
      %p390 = pnand %p388, %p389
      %p391 = pneg %p390
      // Predicated region
      $region9: #{tpu_custom_call.1} parent=5 // pred_check
        _
      $region10: #{tpu_custom_call.1} parent=5 // pred_check_branch
        %393 = sbr.rel (%p390) target = $region12
      $region11: #{tpu_custom_call.1} parent=5 // pred_region
        %s394 = ssub.s32 %s34, 1
        // Predicated region
        $region13: #{tpu_custom_call.1} parent=11 // pred_check
          %p395 = pneg %p81
        $region14: #{tpu_custom_call.1} parent=11 // pred_check_branch
          %397 = sbr.rel (%p395) target = $region16
        $region15: #{tpu_custom_call.1} parent=11 // pred_region
          %s399 = ssub.s32 384, 384
          %400 = vsyncadd [#allocation6], %s399
          %s401 = sshll.u32 [#allocation5], 4
          %s402 = int_to_ptr.vmem [resolvable:$true] %s401
          %407 = dma.hbm_to_vmem [thread:$0]  %s1, 384, %s402, [#allocation6], 128, 128, 8
        $region16: #{tpu_custom_call.1} parent=11 // pred_fallthru
          _
        // Predicated region
        $region17: #{tpu_custom_call.1} parent=11 // pred_check
          %p408 = pneg %p102
        $region18: #{tpu_custom_call.1} parent=11 // pred_check_branch
          %410 = sbr.rel (%p408) target = $region20
        $region19: #{tpu_custom_call.1} parent=11 // pred_region
          %s412 = ssub.s32 128, 128
          %413 = vsyncadd [#allocation6], %s412
          %s415 = sshll.u32 [#allocation7], 4
          %s416 = int_to_ptr.vmem [resolvable:$true] %s415
          %418 = dma.hbm_to_vmem [thread:$0]  %s2, 128, %s416, [#allocation6]
        $region20: #{tpu_custom_call.1} parent=11 // pred_fallthru
          _
        // Predicated region
        $region21: #{tpu_custom_call.1} parent=11 // pred_check
          %p419 = pneg %p123
        $region22: #{tpu_custom_call.1} parent=11 // pred_check_branch
          %421 = sbr.rel (%p419) target = $region24
        $region23: #{tpu_custom_call.1} parent=11 // pred_region
          %s423 = ssub.s32 256, 256
          %424 = vsyncadd [#allocation9], %s423
          %s425 = sshll.u32 [#allocation8], 4
          %s426 = int_to_ptr.vmem [resolvable:$true] %s425
          %431 = dma.hbm_to_vmem [thread:$0]  %s3, 256, %s426, [#allocation9], 128, 128, 8
        $region24: #{tpu_custom_call.1} parent=11 // pred_fallthru
          _
        // Predicated region
        $region25: #{tpu_custom_call.1} parent=11 // pred_check
          %p432 = pneg %p144
        $region26: #{tpu_custom_call.1} parent=11 // pred_check_branch
          %434 = sbr.rel (%p432) target = $region28
        $region27: #{tpu_custom_call.1} parent=11 // pred_region
          %s436 = ssub.s32 128, 128
          %437 = vsyncadd [#allocation9], %s436
          %s439 = sshll.u32 [#allocation10], 4
          %s440 = int_to_ptr.vmem [resolvable:$true] %s439
          %442 = dma.hbm_to_vmem [thread:$0]  %s4, 128, %s440, [#allocation9]
        $region28: #{tpu_custom_call.1} parent=11 // pred_fallthru
          _
        // Predicated region
        $region29: #{tpu_custom_call.1} parent=11 // pred_check
          %p443 = pneg %p165
        $region30: #{tpu_custom_call.1} parent=11 // pred_check_branch
          %445 = sbr.rel (%p443) target = $region32
        $region31: #{tpu_custom_call.1} parent=11 // pred_region
          %s447 = ssub.s32 128, 128
          %448 = vsyncadd [#allocation12], %s447
          %s450 = sshll.u32 [#allocation11], 4
          %s451 = int_to_ptr.vmem [resolvable:$true] %s450
          %453 = dma.hbm_to_vmem [thread:$0]  %s5, 128, %s451, [#allocation12]
        $region32: #{tpu_custom_call.1} parent=11 // pred_fallthru
          _
        // Predicated region
        $region33: #{tpu_custom_call.1} parent=11 // pred_check
          %p454 = pneg %p186
        $region34: #{tpu_custom_call.1} parent=11 // pred_check_branch
          %456 = sbr.rel (%p454) target = $region36
        $region35: #{tpu_custom_call.1} parent=11 // pred_region
          %s458 = ssub.s32 256, 256
          %459 = vsyncadd [#allocation12], %s458
          %s460 = sshll.u32 [#allocation13], 4
          %s461 = int_to_ptr.vmem [resolvable:$true] %s460
          %466 = dma.hbm_to_vmem [thread:$0]  %s6, 256, %s461, [#allocation12], 128, 128, 8
        $region36: #{tpu_custom_call.1} parent=11 // pred_fallthru
          _
        // Predicated region
        $region37: #{tpu_custom_call.1} parent=11 // pred_check
          %p467 = pneg %p207
        $region38: #{tpu_custom_call.1} parent=11 // pred_check_branch
          %469 = sbr.rel (%p467) target = $region40
        $region39: #{tpu_custom_call.1} parent=11 // pred_region
          %s471 = ssub.s32 128, 128
          %472 = vsyncadd [#allocation15], %s471
          %s474 = sshll.u32 [#allocation14], 4
          %s475 = int_to_ptr.vmem [resolvable:$true] %s474
          %477 = dma.hbm_to_vmem [thread:$0]  %s7, 128, %s475, [#allocation15]
        $region40: #{tpu_custom_call.1} parent=11 // pred_fallthru
          _
        // Predicated region
        $region41: #{tpu_custom_call.1} parent=11 // pred_check
          %p478 = pneg %p228
        $region42: #{tpu_custom_call.1} parent=11 // pred_check_branch
          %480 = sbr.rel (%p478) target = $region44
        $region43: #{tpu_custom_call.1} parent=11 // pred_region
          %s482 = ssub.s32 256, 256
          %483 = vsyncadd [#allocation15], %s482
          %s484 = sshll.u32 [#allocation16], 4
          %s485 = int_to_ptr.vmem [resolvable:$true] %s484
          %490 = dma.hbm_to_vmem [thread:$0]  %s8, 256, %s485, [#allocation15], 128, 128, 8
        $region44: #{tpu_custom_call.1} parent=11 // pred_fallthru
          _
        // Predicated region
        $region45: #{tpu_custom_call.1} parent=11 // pred_check
          %p491 = pneg %p249
        $region46: #{tpu_custom_call.1} parent=11 // pred_check_branch
          %493 = sbr.rel (%p491) target = $region48
        $region47: #{tpu_custom_call.1} parent=11 // pred_region
          %s495 = ssub.s32 128, 128
          %496 = vsyncadd [#allocation18], %s495
          %s498 = sshll.u32 [#allocation17], 4
          %s499 = int_to_ptr.vmem [resolvable:$true] %s498
          %501 = dma.hbm_to_vmem [thread:$0]  %s9, 128, %s499, [#allocation18]
        $region48: #{tpu_custom_call.1} parent=11 // pred_fallthru
          _
        // Predicated region
        $region49: #{tpu_custom_call.1} parent=11 // pred_check
          %p502 = pneg %p270
        $region50: #{tpu_custom_call.1} parent=11 // pred_check_branch
          %504 = sbr.rel (%p502) target = $region52
        $region51: #{tpu_custom_call.1} parent=11 // pred_region
          %s506 = ssub.s32 768, 768
          %507 = vsyncadd [#allocation18], %s506
          %s508 = sshll.u32 [#allocation19], 4
          %s509 = int_to_ptr.vmem [resolvable:$true] %s508
          %514 = dma.hbm_to_vmem [thread:$0]  %s10, 768, %s509, [#allocation18], 128, 128, 8
        $region52: #{tpu_custom_call.1} parent=11 // pred_fallthru
          _
        // Predicated region
        $region53: #{tpu_custom_call.1} parent=11 // pred_check
          %p515 = pneg %p291
        $region54: #{tpu_custom_call.1} parent=11 // pred_check_branch
          %517 = sbr.rel (%p515) target = $region56
        $region55: #{tpu_custom_call.1} parent=11 // pred_region
          %s519 = ssub.s32 256, 256
          %520 = vsyncadd [#allocation21], %s519
          %s521 = sshll.u32 [#allocation20], 4
          %s522 = int_to_ptr.vmem [resolvable:$true] %s521
          %527 = dma.hbm_to_vmem [thread:$0]  %s11, 256, %s522, [#allocation21], 128, 128, 8
        $region56: #{tpu_custom_call.1} parent=11 // pred_fallthru
          _
        // Predicated region
        $region57: #{tpu_custom_call.1} parent=11 // pred_check
          %p528 = pneg %p312
        $region58: #{tpu_custom_call.1} parent=11 // pred_check_branch
          %530 = sbr.rel (%p528) target = $region60
        $region59: #{tpu_custom_call.1} parent=11 // pred_region
          %s532 = ssub.s32 512, 512
          %533 = vsyncadd [#allocation21], %s532
          %s534 = sshll.u32 [#allocation22], 4
          %s535 = int_to_ptr.vmem [resolvable:$true] %s534
          %540 = dma.hbm_to_vmem [thread:$0]  %s12, 512, %s535, [#allocation21], 128, 128, 8
        $region60: #{tpu_custom_call.1} parent=11 // pred_fallthru
          _
        // Predicated region
        $region61: #{tpu_custom_call.1} parent=11 // pred_check
          %p541 = pneg %p333
        $region62: #{tpu_custom_call.1} parent=11 // pred_check_branch
          %543 = sbr.rel (%p541) target = $region64
        $region63: #{tpu_custom_call.1} parent=11 // pred_region
          %s545 = ssub.s32 256, 256
          %546 = vsyncadd [#allocation24], %s545
          %s547 = sshll.u32 [#allocation23], 4
          %s548 = int_to_ptr.vmem [resolvable:$true] %s547
          %553 = dma.hbm_to_vmem [thread:$0]  %s13, 256, %s548, [#allocation24], 128, 128, 8
        $region64: #{tpu_custom_call.1} parent=11 // pred_fallthru
          _
        // Predicated region
        $region65: #{tpu_custom_call.1} parent=11 // pred_check
          %p554 = pneg %p354
        $region66: #{tpu_custom_call.1} parent=11 // pred_check_branch
          %556 = sbr.rel (%p554) target = $region68
        $region67: #{tpu_custom_call.1} parent=11 // pred_region
          %s558 = ssub.s32 256, 256
          %559 = vsyncadd [#allocation24], %s558
          %s560 = sshll.u32 [#allocation25], 4
          %s561 = int_to_ptr.vmem [resolvable:$true] %s560
          %566 = dma.hbm_to_vmem [thread:$0]  %s14, 256, %s561, [#allocation24], 128, 128, 8
        $region68: #{tpu_custom_call.1} parent=11 // pred_fallthru
          _
      $region12: #{tpu_custom_call.1} parent=5 // pred_fallthru
        _
      %p567 = scmp.lt.s32.totalorder %s34, 2
      // Predicated region
      $region69: #{tpu_custom_call.1} parent=5 // pred_check
        %p568 = pneg %p567
      $region70: #{tpu_custom_call.1} parent=5 // pred_check_branch
        %570 = sbr.rel (%p568) target = $region72
      $region71: #{tpu_custom_call.1} parent=5 // pred_region
        // Predicated region
        $region73: #{tpu_custom_call.1} parent=71 // pred_check
          %p571 = pneg %p54
        $region74: #{tpu_custom_call.1} parent=71 // pred_check_branch
          %573 = sbr.rel (%p571) target = $region76
        $region75: #{tpu_custom_call.1} parent=71 // pred_region
          %s574 = sand.u32 %s44, 1
          %s575 = scalar_lea.sflag [#allocation3], %s574
          %s576 = sand.u32 %s44, 1
          %s577 = smul.addr %s576, 4
          %s578 = scalar_lea.vmem [#allocation2], %s577
          %s580 = ssub.s32 64, 64
          %581 = vsyncadd %s575, %s580
          %s582 = smul.addr %s34, 64
          %s583 = scalar_lea.hbm %s0, %s582
          %s585 = sshll.u32 %s578, 4
          %s586 = int_to_ptr.vmem [resolvable:$true] %s585
          %588 = dma.hbm_to_vmem [thread:$0]  %s583, 64, %s586, %s575
        $region76: #{tpu_custom_call.1} parent=71 // pred_fallthru
          _
      $region72: #{tpu_custom_call.1} parent=5 // pred_fallthru
        _
      %p589 = scmp.le.s32.totalorder 1, %s34
      %p590 = scmp.lt.s32.totalorder %s34, 3
      %p591 = pnand %p589, %p590
      %p592 = pneg %p591
      // Predicated region
      $region77: #{tpu_custom_call.1} parent=5 // pred_check
        _
      $region78: #{tpu_custom_call.1} parent=5 // pred_check_branch
        %594 = sbr.rel (%p591) target = $region80
      $region79: #{tpu_custom_call.1} parent=5 // pred_region
        %s595 = ssub.s32 %s34, 1
        %s596 = sand.u32 %s47, 1
        %s597 = scalar_lea.sflag [#allocation3], %s596
        %s598 = sand.u32 %s47, 1
        %s599 = smul.addr %s598, 4
        %s600 = scalar_lea.vmem [#allocation2], %s599
        // Predicated region
        $region81: #{tpu_custom_call.1} parent=79 // pred_check
          %p601 = pneg %p60
        $region82: #{tpu_custom_call.1} parent=79 // pred_check_branch
          %603 = sbr.rel (%p601) target = $region84
        $region83: #{tpu_custom_call.1} parent=79 // pred_region
          %604 = dma.done %s597, 64
        $region84: #{tpu_custom_call.1} parent=79 // pred_fallthru
          _
        // Predicated region
        $region85: #{tpu_custom_call.1} parent=79 // pred_check
          %p605 = pneg %p81
        $region86: #{tpu_custom_call.1} parent=79 // pred_check_branch
          %607 = sbr.rel (%p605) target = $region88
        $region87: #{tpu_custom_call.1} parent=79 // pred_region
          %608 = dma.done [#allocation6], 384
        $region88: #{tpu_custom_call.1} parent=79 // pred_fallthru
          _
        // Predicated region
        $region89: #{tpu_custom_call.1} parent=79 // pred_check
          %p609 = pneg %p102
        $region90: #{tpu_custom_call.1} parent=79 // pred_check_branch
          %611 = sbr.rel (%p609) target = $region92
        $region91: #{tpu_custom_call.1} parent=79 // pred_region
          %612 = dma.done [#allocation6], 128
        $region92: #{tpu_custom_call.1} parent=79 // pred_fallthru
          _
        // Predicated region
        $region93: #{tpu_custom_call.1} parent=79 // pred_check
          %p613 = pneg %p123
        $region94: #{tpu_custom_call.1} parent=79 // pred_check_branch
          %615 = sbr.rel (%p613) target = $region96
        $region95: #{tpu_custom_call.1} parent=79 // pred_region
          %616 = dma.done [#allocation9], 256
        $region96: #{tpu_custom_call.1} parent=79 // pred_fallthru
          _
        // Predicated region
        $region97: #{tpu_custom_call.1} parent=79 // pred_check
          %p617 = pneg %p144
        $region98: #{tpu_custom_call.1} parent=79 // pred_check_branch
          %619 = sbr.rel (%p617) target = $region100
        $region99: #{tpu_custom_call.1} parent=79 // pred_region
          %620 = dma.done [#allocation9], 128
        $region100: #{tpu_custom_call.1} parent=79 // pred_fallthru
          _
        // Predicated region
        $region101: #{tpu_custom_call.1} parent=79 // pred_check
          %p621 = pneg %p165
        $region102: #{tpu_custom_call.1} parent=79 // pred_check_branch
          %623 = sbr.rel (%p621) target = $region104
        $region103: #{tpu_custom_call.1} parent=79 // pred_region
          %624 = dma.done [#allocation12], 128
        $region104: #{tpu_custom_call.1} parent=79 // pred_fallthru
          _
        // Predicated region
        $region105: #{tpu_custom_call.1} parent=79 // pred_check
          %p625 = pneg %p186
        $region106: #{tpu_custom_call.1} parent=79 // pred_check_branch
          %627 = sbr.rel (%p625) target = $region108
        $region107: #{tpu_custom_call.1} parent=79 // pred_region
          %628 = dma.done [#allocation12], 256
        $region108: #{tpu_custom_call.1} parent=79 // pred_fallthru
          _
        // Predicated region
        $region109: #{tpu_custom_call.1} parent=79 // pred_check
          %p629 = pneg %p207
        $region110: #{tpu_custom_call.1} parent=79 // pred_check_branch
          %631 = sbr.rel (%p629) target = $region112
        $region111: #{tpu_custom_call.1} parent=79 // pred_region
          %632 = dma.done [#allocation15], 128
        $region112: #{tpu_custom_call.1} parent=79 // pred_fallthru
          _
        // Predicated region
        $region113: #{tpu_custom_call.1} parent=79 // pred_check
          %p633 = pneg %p228
        $region114: #{tpu_custom_call.1} parent=79 // pred_check_branch
          %635 = sbr.rel (%p633) target = $region116
        $region115: #{tpu_custom_call.1} parent=79 // pred_region
          %636 = dma.done [#allocation15], 256
        $region116: #{tpu_custom_call.1} parent=79 // pred_fallthru
          _
        // Predicated region
        $region117: #{tpu_custom_call.1} parent=79 // pred_check
          %p637 = pneg %p249
        $region118: #{tpu_custom_call.1} parent=79 // pred_check_branch
          %639 = sbr.rel (%p637) target = $region120
        $region119: #{tpu_custom_call.1} parent=79 // pred_region
          %640 = dma.done [#allocation18], 128
        $region120: #{tpu_custom_call.1} parent=79 // pred_fallthru
          _
        // Predicated region
        $region121: #{tpu_custom_call.1} parent=79 // pred_check
          %p641 = pneg %p270
        $region122: #{tpu_custom_call.1} parent=79 // pred_check_branch
          %643 = sbr.rel (%p641) target = $region124
        $region123: #{tpu_custom_call.1} parent=79 // pred_region
          %644 = dma.done [#allocation18], 768
        $region124: #{tpu_custom_call.1} parent=79 // pred_fallthru
          _
        // Predicated region
        $region125: #{tpu_custom_call.1} parent=79 // pred_check
          %p645 = pneg %p291
        $region126: #{tpu_custom_call.1} parent=79 // pred_check_branch
          %647 = sbr.rel (%p645) target = $region128
        $region127: #{tpu_custom_call.1} parent=79 // pred_region
          %648 = dma.done [#allocation21], 256
        $region128: #{tpu_custom_call.1} parent=79 // pred_fallthru
          _
        // Predicated region
        $region129: #{tpu_custom_call.1} parent=79 // pred_check
          %p649 = pneg %p312
        $region130: #{tpu_custom_call.1} parent=79 // pred_check_branch
          %651 = sbr.rel (%p649) target = $region132
        $region131: #{tpu_custom_call.1} parent=79 // pred_region
          %652 = dma.done [#allocation21], 512
        $region132: #{tpu_custom_call.1} parent=79 // pred_fallthru
          _
        // Predicated region
        $region133: #{tpu_custom_call.1} parent=79 // pred_check
          %p653 = pneg %p333
        $region134: #{tpu_custom_call.1} parent=79 // pred_check_branch
          %655 = sbr.rel (%p653) target = $region136
        $region135: #{tpu_custom_call.1} parent=79 // pred_region
          %656 = dma.done [#allocation24], 256
        $region136: #{tpu_custom_call.1} parent=79 // pred_fallthru
          _
        // Predicated region
        $region137: #{tpu_custom_call.1} parent=79 // pred_check
          %p657 = pneg %p354
        $region138: #{tpu_custom_call.1} parent=79 // pred_check_branch
          %659 = sbr.rel (%p657) target = $region140
        $region139: #{tpu_custom_call.1} parent=79 // pred_region
          %660 = dma.done [#allocation24], 256
        $region140: #{tpu_custom_call.1} parent=79 // pred_fallthru
          _
        %s661 = sand.u32 %s47, 1
        %s662 = scalar_lea.sflag [#allocation3], %s661
        %s663 = sand.u32 %s47, 1
        %s664 = smul.addr %s663, 4
        %s665 = scalar_lea.vmem [#allocation2], %s664
        %p666 = pneg %p60
        %p667 = pneg %p57
        %p668 = pneg %p81
        %p669 = pneg %p78
        %p670 = pneg %p102
        %p671 = pneg %p99
        %p672 = pneg %p123
        %p673 = pneg %p120
        %p674 = pneg %p144
        %p675 = pneg %p141
        %p676 = pneg %p165
        %p677 = pneg %p162
        %p678 = pneg %p186
        %p679 = pneg %p183
        %p680 = pneg %p207
        %p681 = pneg %p204
        %p682 = pneg %p228
        %p683 = pneg %p225
        %p684 = pneg %p249
        %p685 = pneg %p246
        %p686 = pneg %p270
        %p687 = pneg %p267
        %p688 = pneg %p291
        %p689 = pneg %p288
        %p690 = pneg %p312
        %p691 = pneg %p309
        %p692 = pneg %p333
        %p693 = pneg %p330
        %p694 = pneg %p354
        %p695 = pneg %p351
        %p696 = pneg %p380
        %p697 = pneg %p377
        %s698 = sand.u32 %s367, 1
        %s699 = scalar_lea.sflag [#allocation4], %s698
        %s700 = sand.u32 %s367, 1
        %s701 = smul.addr %s700, 16
        %s702 = scalar_lea.vmem [#allocation26], %s701
        %v703 = vld [vmem:[%s600] sm:$0xf]
        %v704 = vlaneseq
        %v705 = vand.u32 %v704, 127
        %vm706 = vcmp.lt.s32.totalorder %v705, 1
        %vm707 = vcmp.lt.s32.totalorder %v705, 2
        %vm708 = vcmp.lt.s32.totalorder %v705, 4
        %v709 = vld [vmem:[#allocation5] sm:$0xff]
        %v710 = vld [vmem:[#allocation5 + $0x8] sm:$0xff]
        %v711 = vld [vmem:[#allocation5 + $0x10] sm:$0xff]
        %v712 = vld [vmem:[#allocation7] sm:$0xff]
        %v713 = vld [vmem:[#allocation8] sm:$0xff]
        %v714 = vld [vmem:[#allocation8 + $0x8] sm:$0xff]
        %v715 = vld [vmem:[#allocation10] sm:$0xff]
        %v716 = vld [vmem:[#allocation11] sm:$0xff]
        %vm717 = vcmask 31744
        %v719 = vsel %vm717, %v709, 0
        %v722 = vsel %vm717, %v710, 0
        %v725 = vsel %vm717, %v711, 0
        %vm727 = vcmask 1043456
        %v729 = vsel %vm727, %v703, 0
        %731 = vmatprep.subr.mxu0 0.0
        %732 = vmatpush1.msra.mxu0 %v729
        %733 = vmatprep.subr.mxu0 0.0
        %734 = vmatpush1.msra.mxu0 0.0
        %735 = vmatprep.subr.mxu0 0.0
        %736 = vmatpush1.msra.mxu0 0.0
        %737 = vmatprep.subr.mxu0 0.0
        %738 = vmatpush1.msra.mxu0 0.0
        %739 = vmatprep.subr.mxu0 0.0
        %740 = vmatpush1.msra.mxu0 0.0
        %741 = vmatprep.subr.mxu0 0.0
        %742 = vmatpush1.msra.mxu0 0.0
        %743 = vmatprep.subr.mxu0 0.0
        %744 = vmatpush1.msra.mxu0 0.0
        %745 = vmatprep.subr.mxu0 0.0
        %746 = vmatpush1.msra.mxu0 0.0
        %747 = vmatprep.subr.mxu0 0.0
        %748 = vmatpush1.msra.mxu0 0.0
        %749 = vmatprep.subr.mxu0 0.0
        %750 = vmatpush1.msra.mxu0 0.0
        %751 = vmatprep.subr.mxu0 0.0
        %752 = vmatpush1.msra.mxu0 0.0
        %753 = vmatprep.subr.mxu0 0.0
        %754 = vmatpush1.msra.mxu0 0.0
        %755 = vmatprep.subr.mxu0 0.0
        %756 = vmatpush1.msra.mxu0 0.0
        %757 = vmatprep.subr.mxu0 0.0
        %758 = vmatpush1.msra.mxu0 0.0
        %759 = vmatprep.subr.mxu0 0.0
        %760 = vmatpush1.msra.mxu0 0.0
        %761 = vmatprep.subr.mxu0 0.0
        %762 = vmatpush1.msra.mxu0 0.0
        %763 = vmatprep.subr.mxu0 0.0
        %764 = vmatpush1.msra.mxu0 0.0
        %765 = vmatprep.subr.mxu0 0.0
        %766 = vmatpush1.msra.mxu0 0.0
        %767 = vmatprep.subr.mxu0 0.0
        %768 = vmatpush1.msra.mxu0 0.0
        %769 = vmatprep.subr.mxu0 0.0
        %770 = vmatpush1.msra.mxu0 0.0
        %771 = vmatprep.subr.mxu0 0.0
        %772 = vmatpush1.msra.mxu0 0.0
        %773 = vmatprep.subr.mxu0 0.0
        %774 = vmatpush1.msra.mxu0 0.0
        %775 = vmatprep.subr.mxu0 0.0
        %776 = vmatpush1.msra.mxu0 0.0
        %777 = vmatprep.subr.mxu0 0.0
        %778 = vmatpush1.msra.mxu0 0.0
        %779 = vmatprep.subr.mxu0 0.0
        %780 = vmatpush1.msra.mxu0 0.0
        %781 = vmatprep.subr.mxu0 0.0
        %782 = vmatpush1.msra.mxu0 0.0
        %783 = vmatprep.subr.mxu0 0.0
        %784 = vmatpush1.msra.mxu0 0.0
        %785 = vmatprep.subr.mxu0 0.0
        %786 = vmatpush1.msra.mxu0 0.0
        %787 = vmatprep.subr.mxu0 0.0
        %788 = vmatpush1.msra.mxu0 0.0
        %789 = vmatprep.subr.mxu0 0.0
        %790 = vmatpush1.msra.mxu0 0.0
        %791 = vmatprep.subr.mxu0 0.0
        %792 = vmatpush1.msra.mxu0 0.0
        %793 = vmatprep.subr.mxu0 0.0
        %794 = vmatpush1.msra.mxu0 0.0
        %795 = vmatprep.mubr.f32.mxu0 0.0
        %796 = vmatmul.mubr.f32.gmra.mrb[0].mxu0 %v719
        %v797 = vpop.f32.mrb[0].mxu0
        %v798 = vadd.f32 0.0, %v797
        %v799 = vpop.f32.mrb[0].mxu0
        %800 = vmatprep.mubr.f32.mxu0 0.0
        %801 = vmatmul.mubr.f32.gmra.mrb[0].mxu0 %v722
        %v802 = vpop.f32.mrb[0].mxu0
        %v803 = vadd.f32 0.0, %v802
        %v804 = vpop.f32.mrb[0].mxu0
        %805 = vmatprep.mubr.f32.mxu0 0.0
        %806 = vmatmul.mubr.f32.gmra.mrb[0].mxu0 %v725
        %v807 = vpop.f32.mrb[0].mxu0
        %v808 = vadd.f32 0.0, %v807
        %v809 = vpop.f32.mrb[0].mxu0
        %810 = vdwg.mxu0
        %811 = vrot.lane.b32.xlu0 %v798, 1
        %v812 = vpop.permute.xlu0 %811
        %v813 = vsel %vm706, 1, 0
        %vm814 = vcmp.eq.s32.totalorder %v813, 1
        %v815 = vsel %vm814, 0.0, %v812
        %v816 = vadd.f32 %v815, %v803
        %818 = vset.pattern.permute.xlu0 0
        %819 = vperm.xlu0 %818, %v712
        %v820 = vpop.permute.xlu0 %819
        %v822 = vadd.f32 %v816, %v820
        %v823 = vmax.f32 %v822, 0.0
        %vm824 = vcmask 64512
        %v826 = vsel %vm824, %v713, 0
        %v829 = vsel %vm824, %v714, 0
        %831 = vmatprep.subr.mxu0 0.0
        %832 = vmatpush1.msra.mxu0 %v823
        %833 = vmatprep.subr.mxu0 0.0
        %834 = vmatpush1.msra.mxu0 0.0
        %835 = vmatprep.subr.mxu0 0.0
        %836 = vmatpush1.msra.mxu0 0.0
        %837 = vmatprep.subr.mxu0 0.0
        %838 = vmatpush1.msra.mxu0 0.0
        %839 = vmatprep.subr.mxu0 0.0
        %840 = vmatpush1.msra.mxu0 0.0
        %841 = vmatprep.subr.mxu0 0.0
        %842 = vmatpush1.msra.mxu0 0.0
        %843 = vmatprep.subr.mxu0 0.0
        %844 = vmatpush1.msra.mxu0 0.0
        %845 = vmatprep.subr.mxu0 0.0
        %846 = vmatpush1.msra.mxu0 0.0
        %847 = vmatprep.subr.mxu0 0.0
        %848 = vmatpush1.msra.mxu0 0.0
        %849 = vmatprep.subr.mxu0 0.0
        %850 = vmatpush1.msra.mxu0 0.0
        %851 = vmatprep.subr.mxu0 0.0
        %852 = vmatpush1.msra.mxu0 0.0
        %853 = vmatprep.subr.mxu0 0.0
        %854 = vmatpush1.msra.mxu0 0.0
        %855 = vmatprep.subr.mxu0 0.0
        %856 = vmatpush1.msra.mxu0 0.0
        %857 = vmatprep.subr.mxu0 0.0
        %858 = vmatpush1.msra.mxu0 0.0
        %859 = vmatprep.subr.mxu0 0.0
        %860 = vmatpush1.msra.mxu0 0.0
        %861 = vmatprep.subr.mxu0 0.0
        %862 = vmatpush1.msra.mxu0 0.0
        %863 = vmatprep.subr.mxu0 0.0
        %864 = vmatpush1.msra.mxu0 0.0
        %865 = vmatprep.subr.mxu0 0.0
        %866 = vmatpush1.msra.mxu0 0.0
        %867 = vmatprep.subr.mxu0 0.0
        %868 = vmatpush1.msra.mxu0 0.0
        %869 = vmatprep.subr.mxu0 0.0
        %870 = vmatpush1.msra.mxu0 0.0
        %871 = vmatprep.subr.mxu0 0.0
        %872 = vmatpush1.msra.mxu0 0.0
        %873 = vmatprep.subr.mxu0 0.0
        %874 = vmatpush1.msra.mxu0 0.0
        %875 = vmatprep.subr.mxu0 0.0
        %876 = vmatpush1.msra.mxu0 0.0
        %877 = vmatprep.subr.mxu0 0.0
        %878 = vmatpush1.msra.mxu0 0.0
        %879 = vmatprep.subr.mxu0 0.0
        %880 = vmatpush1.msra.mxu0 0.0
        %881 = vmatprep.subr.mxu0 0.0
        %882 = vmatpush1.msra.mxu0 0.0
        %883 = vmatprep.subr.mxu0 0.0
        %884 = vmatpush1.msra.mxu0 0.0
        %885 = vmatprep.subr.mxu0 0.0
        %886 = vmatpush1.msra.mxu0 0.0
        %887 = vmatprep.subr.mxu0 0.0
        %888 = vmatpush1.msra.mxu0 0.0
        %889 = vmatprep.subr.mxu0 0.0
        %890 = vmatpush1.msra.mxu0 0.0
        %891 = vmatprep.subr.mxu0 0.0
        %892 = vmatpush1.msra.mxu0 0.0
        %893 = vmatprep.subr.mxu0 0.0
        %894 = vmatpush1.msra.mxu0 0.0
        %895 = vmatprep.mubr.f32.mxu0 0.0
        %896 = vmatmul.mubr.f32.gmra.mrb[0].mxu0 %v826
        %v897 = vpop.f32.mrb[0].mxu0
        %v898 = vadd.f32 0.0, %v897
        %v899 = vpop.f32.mrb[0].mxu0
        %900 = vmatprep.mubr.f32.mxu0 0.0
        %901 = vmatmul.mubr.f32.gmra.mrb[0].mxu0 %v829
        %v902 = vpop.f32.mrb[0].mxu0
        %v903 = vadd.f32 0.0, %v902
        %v904 = vpop.f32.mrb[0].mxu0
        %905 = vdwg.mxu0
        %906 = vrot.lane.b32.xlu0 %v898, 1
        %v907 = vpop.permute.xlu0 %906
        %v908 = vsel %vm814, 0.0, %v907
        %v909 = vadd.f32 %v908, %v903
        %911 = vset.pattern.permute.xlu0 0
        %912 = vperm.xlu0 %911, %v715
        %v913 = vpop.permute.xlu0 %912
        %v915 = vadd.f32 %v909, %v913
        %v916 = vmax.f32 %v915, 0.0
        %918 = vset.pattern.permute.xlu0 0
        %919 = vperm.xlu0 %918, %v716
        %v920 = vpop.permute.xlu0 %919
        %v922 = vadd.f32 %v808, %v920
        %v923 = vadd.f32 %v916, %v922
        %v924 = vmax.f32 %v923, 0.0
        %v925 = vld [vmem:[#allocation13] sm:$0xff]
        %v926 = vld [vmem:[#allocation13 + $0x8] sm:$0xff]
        %v927 = vld [vmem:[#allocation14] sm:$0xff]
        %v928 = vld [vmem:[#allocation16] sm:$0xff]
        %v929 = vld [vmem:[#allocation16 + $0x8] sm:$0xff]
        %v930 = vld [vmem:[#allocation17] sm:$0xff]
        %v932 = vsel %vm824, %v925, 0
        %v935 = vsel %vm824, %v926, 0
        %937 = vmatprep.subr.mxu0 0.0
        %938 = vmatpush1.msra.mxu0 %v924
        %939 = vmatprep.subr.mxu0 0.0
        %940 = vmatpush1.msra.mxu0 0.0
        %941 = vmatprep.subr.mxu0 0.0
        %942 = vmatpush1.msra.mxu0 0.0
        %943 = vmatprep.subr.mxu0 0.0
        %944 = vmatpush1.msra.mxu0 0.0
        %945 = vmatprep.subr.mxu0 0.0
        %946 = vmatpush1.msra.mxu0 0.0
        %947 = vmatprep.subr.mxu0 0.0
        %948 = vmatpush1.msra.mxu0 0.0
        %949 = vmatprep.subr.mxu0 0.0
        %950 = vmatpush1.msra.mxu0 0.0
        %951 = vmatprep.subr.mxu0 0.0
        %952 = vmatpush1.msra.mxu0 0.0
        %953 = vmatprep.subr.mxu0 0.0
        %954 = vmatpush1.msra.mxu0 0.0
        %955 = vmatprep.subr.mxu0 0.0
        %956 = vmatpush1.msra.mxu0 0.0
        %957 = vmatprep.subr.mxu0 0.0
        %958 = vmatpush1.msra.mxu0 0.0
        %959 = vmatprep.subr.mxu0 0.0
        %960 = vmatpush1.msra.mxu0 0.0
        %961 = vmatprep.subr.mxu0 0.0
        %962 = vmatpush1.msra.mxu0 0.0
        %963 = vmatprep.subr.mxu0 0.0
        %964 = vmatpush1.msra.mxu0 0.0
        %965 = vmatprep.subr.mxu0 0.0
        %966 = vmatpush1.msra.mxu0 0.0
        %967 = vmatprep.subr.mxu0 0.0
        %968 = vmatpush1.msra.mxu0 0.0
        %969 = vmatprep.subr.mxu0 0.0
        %970 = vmatpush1.msra.mxu0 0.0
        %971 = vmatprep.subr.mxu0 0.0
        %972 = vmatpush1.msra.mxu0 0.0
        %973 = vmatprep.subr.mxu0 0.0
        %974 = vmatpush1.msra.mxu0 0.0
        %975 = vmatprep.subr.mxu0 0.0
        %976 = vmatpush1.msra.mxu0 0.0
        %977 = vmatprep.subr.mxu0 0.0
        %978 = vmatpush1.msra.mxu0 0.0
        %979 = vmatprep.subr.mxu0 0.0
        %980 = vmatpush1.msra.mxu0 0.0
        %981 = vmatprep.subr.mxu0 0.0
        %982 = vmatpush1.msra.mxu0 0.0
        %983 = vmatprep.subr.mxu0 0.0
        %984 = vmatpush1.msra.mxu0 0.0
        %985 = vmatprep.subr.mxu0 0.0
        %986 = vmatpush1.msra.mxu0 0.0
        %987 = vmatprep.subr.mxu0 0.0
        %988 = vmatpush1.msra.mxu0 0.0
        %989 = vmatprep.subr.mxu0 0.0
        %990 = vmatpush1.msra.mxu0 0.0
        %991 = vmatprep.subr.mxu0 0.0
        %992 = vmatpush1.msra.mxu0 0.0
        %993 = vmatprep.subr.mxu0 0.0
        %994 = vmatpush1.msra.mxu0 0.0
        %995 = vmatprep.subr.mxu0 0.0
        %996 = vmatpush1.msra.mxu0 0.0
        %997 = vmatprep.subr.mxu0 0.0
        %998 = vmatpush1.msra.mxu0 0.0
        %999 = vmatprep.subr.mxu0 0.0
        %1000 = vmatpush1.msra.mxu0 0.0
        %1001 = vmatprep.mubr.f32.mxu0 0.0
        %1002 = vmatmul.mubr.f32.gmra.mrb[0].mxu0 %v932
        %v1003 = vpop.f32.mrb[0].mxu0
        %v1004 = vadd.f32 0.0, %v1003
        %v1005 = vpop.f32.mrb[0].mxu0
        %1006 = vmatprep.mubr.f32.mxu0 0.0
        %1007 = vmatmul.mubr.f32.gmra.mrb[0].mxu0 %v935
        %v1008 = vpop.f32.mrb[0].mxu0
        %v1009 = vadd.f32 0.0, %v1008
        %v1010 = vpop.f32.mrb[0].mxu0
        %1011 = vdwg.mxu0
        %1012 = vrot.lane.b32.xlu0 %v1004, 2
        %v1013 = vpop.permute.xlu0 %1012
        %v1014 = vsel %vm707, 1, 0
        %vm1015 = vcmp.eq.s32.totalorder %v1014, 1
        %v1016 = vsel %vm1015, 0.0, %v1013
        %v1017 = vadd.f32 %v1016, %v1009
        %1019 = vset.pattern.permute.xlu0 0
        %1020 = vperm.xlu0 %1019, %v927
        %v1021 = vpop.permute.xlu0 %1020
        %v1023 = vadd.f32 %v1017, %v1021
        %v1024 = vmax.f32 %v1023, 0.0
        %v1026 = vsel %vm824, %v928, 0
        %v1029 = vsel %vm824, %v929, 0
        %1031 = vmatprep.subr.mxu0 0.0
        %1032 = vmatpush1.msra.mxu0 %v1024
        %1033 = vmatprep.subr.mxu0 0.0
        %1034 = vmatpush1.msra.mxu0 0.0
        %1035 = vmatprep.subr.mxu0 0.0
        %1036 = vmatpush1.msra.mxu0 0.0
        %1037 = vmatprep.subr.mxu0 0.0
        %1038 = vmatpush1.msra.mxu0 0.0
        %1039 = vmatprep.subr.mxu0 0.0
        %1040 = vmatpush1.msra.mxu0 0.0
        %1041 = vmatprep.subr.mxu0 0.0
        %1042 = vmatpush1.msra.mxu0 0.0
        %1043 = vmatprep.subr.mxu0 0.0
        %1044 = vmatpush1.msra.mxu0 0.0
        %1045 = vmatprep.subr.mxu0 0.0
        %1046 = vmatpush1.msra.mxu0 0.0
        %1047 = vmatprep.subr.mxu0 0.0
        %1048 = vmatpush1.msra.mxu0 0.0
        %1049 = vmatprep.subr.mxu0 0.0
        %1050 = vmatpush1.msra.mxu0 0.0
        %1051 = vmatprep.subr.mxu0 0.0
        %1052 = vmatpush1.msra.mxu0 0.0
        %1053 = vmatprep.subr.mxu0 0.0
        %1054 = vmatpush1.msra.mxu0 0.0
        %1055 = vmatprep.subr.mxu0 0.0
        %1056 = vmatpush1.msra.mxu0 0.0
        %1057 = vmatprep.subr.mxu0 0.0
        %1058 = vmatpush1.msra.mxu0 0.0
        %1059 = vmatprep.subr.mxu0 0.0
        %1060 = vmatpush1.msra.mxu0 0.0
        %1061 = vmatprep.subr.mxu0 0.0
        %1062 = vmatpush1.msra.mxu0 0.0
        %1063 = vmatprep.subr.mxu0 0.0
        %1064 = vmatpush1.msra.mxu0 0.0
        %1065 = vmatprep.subr.mxu0 0.0
        %1066 = vmatpush1.msra.mxu0 0.0
        %1067 = vmatprep.subr.mxu0 0.0
        %1068 = vmatpush1.msra.mxu0 0.0
        %1069 = vmatprep.subr.mxu0 0.0
        %1070 = vmatpush1.msra.mxu0 0.0
        %1071 = vmatprep.subr.mxu0 0.0
        %1072 = vmatpush1.msra.mxu0 0.0
        %1073 = vmatprep.subr.mxu0 0.0
        %1074 = vmatpush1.msra.mxu0 0.0
        %1075 = vmatprep.subr.mxu0 0.0
        %1076 = vmatpush1.msra.mxu0 0.0
        %1077 = vmatprep.subr.mxu0 0.0
        %1078 = vmatpush1.msra.mxu0 0.0
        %1079 = vmatprep.subr.mxu0 0.0
        %1080 = vmatpush1.msra.mxu0 0.0
        %1081 = vmatprep.subr.mxu0 0.0
        %1082 = vmatpush1.msra.mxu0 0.0
        %1083 = vmatprep.subr.mxu0 0.0
        %1084 = vmatpush1.msra.mxu0 0.0
        %1085 = vmatprep.subr.mxu0 0.0
        %1086 = vmatpush1.msra.mxu0 0.0
        %1087 = vmatprep.subr.mxu0 0.0
        %1088 = vmatpush1.msra.mxu0 0.0
        %1089 = vmatprep.subr.mxu0 0.0
        %1090 = vmatpush1.msra.mxu0 0.0
        %1091 = vmatprep.subr.mxu0 0.0
        %1092 = vmatpush1.msra.mxu0 0.0
        %1093 = vmatprep.subr.mxu0 0.0
        %1094 = vmatpush1.msra.mxu0 0.0
        %1095 = vmatprep.mubr.f32.mxu0 0.0
        %1096 = vmatmul.mubr.f32.gmra.mrb[0].mxu0 %v1026
        %v1097 = vpop.f32.mrb[0].mxu0
        %v1098 = vadd.f32 0.0, %v1097
        %v1099 = vpop.f32.mrb[0].mxu0
        %1100 = vmatprep.mubr.f32.mxu0 0.0
        %1101 = vmatmul.mubr.f32.gmra.mrb[0].mxu0 %v1029
        %v1102 = vpop.f32.mrb[0].mxu0
        %v1103 = vadd.f32 0.0, %v1102
        %v1104 = vpop.f32.mrb[0].mxu0
        %1105 = vdwg.mxu0
        %1106 = vrot.lane.b32.xlu0 %v1098, 2
        %v1107 = vpop.permute.xlu0 %1106
        %v1108 = vsel %vm1015, 0.0, %v1107
        %v1109 = vadd.f32 %v1108, %v1103
        %1111 = vset.pattern.permute.xlu0 0
        %1112 = vperm.xlu0 %1111, %v930
        %v1113 = vpop.permute.xlu0 %1112
        %v1115 = vadd.f32 %v1109, %v1113
        %v1116 = vmax.f32 %v1115, 0.0
        %v1117 = vadd.f32 %v1116, %v924
        %v1118 = vmax.f32 %v1117, 0.0
        %v1119 = vld [vmem:[#allocation19] sm:$0xff]
        %v1120 = vld [vmem:[#allocation19 + $0x8] sm:$0xff]
        %v1121 = vld [vmem:[#allocation19 + $0x10] sm:$0xff]
        %v1122 = vld [vmem:[#allocation19 + $0x18] sm:$0xff]
        %v1123 = vld [vmem:[#allocation19 + $0x20] sm:$0xff]
        %v1124 = vld [vmem:[#allocation19 + $0x28] sm:$0xff]
        %v1125 = vld [vmem:[#allocation20] sm:$0xff]
        %v1126 = vld [vmem:[#allocation20 + $0x8] sm:$0xff]
        %v1127 = vld [vmem:[#allocation22] sm:$0xff]
        %v1128 = vld [vmem:[#allocation22 + $0x8] sm:$0xff]
        %v1129 = vld [vmem:[#allocation22 + $0x10] sm:$0xff]
        %v1130 = vld [vmem:[#allocation22 + $0x18] sm:$0xff]
        %v1131 = vld [vmem:[#allocation23] sm:$0xff]
        %v1132 = vld [vmem:[#allocation23 + $0x8] sm:$0xff]
        %v1133 = vld [vmem:[#allocation25] sm:$0xff]
        %v1134 = vld [vmem:[#allocation25 + $0x8] sm:$0xff]
        %v1136 = vsel %vm824, %v1119, 0
        %v1139 = vsel %vm824, %v1120, 0
        %v1142 = vsel %vm824, %v1121, 0
        %v1145 = vsel %vm824, %v1122, 0
        %v1148 = vsel %vm824, %v1123, 0
        %v1151 = vsel %vm824, %v1124, 0
        %1153 = vmatprep.subr.mxu0 0.0
        %1154 = vmatpush1.msra.mxu0 %v1118
        %1155 = vmatprep.subr.mxu0 0.0
        %1156 = vmatpush1.msra.mxu0 0.0
        %1157 = vmatprep.subr.mxu0 0.0
        %1158 = vmatpush1.msra.mxu0 0.0
        %1159 = vmatprep.subr.mxu0 0.0
        %1160 = vmatpush1.msra.mxu0 0.0
        %1161 = vmatprep.subr.mxu0 0.0
        %1162 = vmatpush1.msra.mxu0 0.0
        %1163 = vmatprep.subr.mxu0 0.0
        %1164 = vmatpush1.msra.mxu0 0.0
        %1165 = vmatprep.subr.mxu0 0.0
        %1166 = vmatpush1.msra.mxu0 0.0
        %1167 = vmatprep.subr.mxu0 0.0
        %1168 = vmatpush1.msra.mxu0 0.0
        %1169 = vmatprep.subr.mxu0 0.0
        %1170 = vmatpush1.msra.mxu0 0.0
        %1171 = vmatprep.subr.mxu0 0.0
        %1172 = vmatpush1.msra.mxu0 0.0
        %1173 = vmatprep.subr.mxu0 0.0
        %1174 = vmatpush1.msra.mxu0 0.0
        %1175 = vmatprep.subr.mxu0 0.0
        %1176 = vmatpush1.msra.mxu0 0.0
        %1177 = vmatprep.subr.mxu0 0.0
        %1178 = vmatpush1.msra.mxu0 0.0
        %1179 = vmatprep.subr.mxu0 0.0
        %1180 = vmatpush1.msra.mxu0 0.0
        %1181 = vmatprep.subr.mxu0 0.0
        %1182 = vmatpush1.msra.mxu0 0.0
        %1183 = vmatprep.subr.mxu0 0.0
        %1184 = vmatpush1.msra.mxu0 0.0
        %1185 = vmatprep.subr.mxu0 0.0
        %1186 = vmatpush1.msra.mxu0 0.0
        %1187 = vmatprep.subr.mxu0 0.0
        %1188 = vmatpush1.msra.mxu0 0.0
        %1189 = vmatprep.subr.mxu0 0.0
        %1190 = vmatpush1.msra.mxu0 0.0
        %1191 = vmatprep.subr.mxu0 0.0
        %1192 = vmatpush1.msra.mxu0 0.0
        %1193 = vmatprep.subr.mxu0 0.0
        %1194 = vmatpush1.msra.mxu0 0.0
        %1195 = vmatprep.subr.mxu0 0.0
        %1196 = vmatpush1.msra.mxu0 0.0
        %1197 = vmatprep.subr.mxu0 0.0
        %1198 = vmatpush1.msra.mxu0 0.0
        %1199 = vmatprep.subr.mxu0 0.0
        %1200 = vmatpush1.msra.mxu0 0.0
        %1201 = vmatprep.subr.mxu0 0.0
        %1202 = vmatpush1.msra.mxu0 0.0
        %1203 = vmatprep.subr.mxu0 0.0
        %1204 = vmatpush1.msra.mxu0 0.0
        %1205 = vmatprep.subr.mxu0 0.0
        %1206 = vmatpush1.msra.mxu0 0.0
        %1207 = vmatprep.subr.mxu0 0.0
        %1208 = vmatpush1.msra.mxu0 0.0
        %1209 = vmatprep.subr.mxu0 0.0
        %1210 = vmatpush1.msra.mxu0 0.0
        %1211 = vmatprep.subr.mxu0 0.0
        %1212 = vmatpush1.msra.mxu0 0.0
        %1213 = vmatprep.subr.mxu0 0.0
        %1214 = vmatpush1.msra.mxu0 0.0
        %1215 = vmatprep.subr.mxu0 0.0
        %1216 = vmatpush1.msra.mxu0 0.0
        %1217 = vmatprep.mubr.f32.mxu0 0.0
        %1218 = vmatmul.mubr.f32.gmra.mrb[0].mxu0 %v1136
        %v1219 = vpop.f32.mrb[0].mxu0
        %v1220 = vadd.f32 0.0, %v1219
        %v1221 = vpop.f32.mrb[0].mxu0
        %1222 = vmatprep.mubr.f32.mxu0 0.0
        %1223 = vmatmul.mubr.f32.gmra.mrb[0].mxu0 %v1139
        %v1224 = vpop.f32.mrb[0].mxu0
        %v1225 = vadd.f32 0.0, %v1224
        %v1226 = vpop.f32.mrb[0].mxu0
        %1227 = vmatprep.mubr.f32.mxu0 0.0
        %1228 = vmatmul.mubr.f32.gmra.mrb[0].mxu0 %v1142
        %v1229 = vpop.f32.mrb[0].mxu0
        %v1230 = vadd.f32 0.0, %v1229
        %v1231 = vpop.f32.mrb[0].mxu0
        %1232 = vmatprep.mubr.f32.mxu0 0.0
        %1233 = vmatmul.mubr.f32.gmra.mrb[0].mxu0 %v1145
        %v1234 = vpop.f32.mrb[0].mxu0
        %v1235 = vadd.f32 0.0, %v1234
        %v1236 = vpop.f32.mrb[0].mxu0
        %1237 = vmatprep.mubr.f32.mxu0 0.0
        %1238 = vmatmul.mubr.f32.gmra.mrb[0].mxu0 %v1148
        %v1239 = vpop.f32.mrb[0].mxu0
        %v1240 = vadd.f32 0.0, %v1239
        %v1241 = vpop.f32.mrb[0].mxu0
        %1242 = vmatprep.mubr.f32.mxu0 0.0
        %1243 = vmatmul.mubr.f32.gmra.mrb[0].mxu0 %v1151
        %v1244 = vpop.f32.mrb[0].mxu0
        %v1245 = vadd.f32 0.0, %v1244
        %v1246 = vpop.f32.mrb[0].mxu0
        %1247 = vdwg.mxu0
        %1248 = vrot.lane.b32.xlu0 %v1220, 4
        %v1249 = vpop.permute.xlu0 %1248
        %1250 = vrot.lane.b32.xlu0 %v1225, 4
        %v1251 = vpop.permute.xlu0 %1250
        %v1252 = vsel %vm708, 1, 0
        %vm1253 = vcmp.eq.s32.totalorder %v1252, 1
        %v1254 = vsel %vm1253, 0.0, %v1249
        %v1255 = vsel %vm1253, 0.0, %v1251
        %v1256 = vadd.f32 %v1254, %v1230
        %v1257 = vadd.f32 %v1255, %v1235
        %1259 = vset.pattern.permute.xlu0 0
        %1260 = vperm.xlu0 %1259, %v1125
        %v1261 = vpop.permute.xlu0 %1260
        %1264 = vset.pattern.permute.xlu0 0
        %1265 = vperm.xlu0 %1264, %v1126
        %v1266 = vpop.permute.xlu0 %1265
        %v1268 = vadd.f32 %v1256, %v1261
        %v1269 = vadd.f32 %v1257, %v1266
        %v1270 = vmax.f32 %v1268, 0.0
        %v1271 = vmax.f32 %v1269, 0.0
        %vm1272 = vcmask 130048
        %v1274 = vsel %vm1272, %v1127, 0
        %v1277 = vsel %vm1272, %v1128, 0
        %v1280 = vsel %vm1272, %v1129, 0
        %v1283 = vsel %vm1272, %v1130, 0
        %1285 = vmatprep.subr.mxu0 0.0
        %1286 = vmatpush1.msra.mxu0 %v1270
        %1287 = vmatprep.subr.mxu0 0.0
        %1288 = vmatpush1.msra.mxu0 %v1271
        %1289 = vmatprep.subr.mxu0 0.0
        %1290 = vmatpush1.msra.mxu0 0.0
        %1291 = vmatprep.subr.mxu0 0.0
        %1292 = vmatpush1.msra.mxu0 0.0
        %1293 = vmatprep.subr.mxu0 0.0
        %1294 = vmatpush1.msra.mxu0 0.0
        %1295 = vmatprep.subr.mxu0 0.0
        %1296 = vmatpush1.msra.mxu0 0.0
        %1297 = vmatprep.subr.mxu0 0.0
        %1298 = vmatpush1.msra.mxu0 0.0
        %1299 = vmatprep.subr.mxu0 0.0
        %1300 = vmatpush1.msra.mxu0 0.0
        %1301 = vmatprep.subr.mxu0 0.0
        %1302 = vmatpush1.msra.mxu0 0.0
        %1303 = vmatprep.subr.mxu0 0.0
        %1304 = vmatpush1.msra.mxu0 0.0
        %1305 = vmatprep.subr.mxu0 0.0
        %1306 = vmatpush1.msra.mxu0 0.0
        %1307 = vmatprep.subr.mxu0 0.0
        %1308 = vmatpush1.msra.mxu0 0.0
        %1309 = vmatprep.subr.mxu0 0.0
        %1310 = vmatpush1.msra.mxu0 0.0
        %1311 = vmatprep.subr.mxu0 0.0
        %1312 = vmatpush1.msra.mxu0 0.0
        %1313 = vmatprep.subr.mxu0 0.0
        %1314 = vmatpush1.msra.mxu0 0.0
        %1315 = vmatprep.subr.mxu0 0.0
        %1316 = vmatpush1.msra.mxu0 0.0
        %1317 = vmatprep.subr.mxu0 0.0
        %1318 = vmatpush1.msra.mxu0 0.0
        %1319 = vmatprep.subr.mxu0 0.0
        %1320 = vmatpush1.msra.mxu0 0.0
        %1321 = vmatprep.subr.mxu0 0.0
        %1322 = vmatpush1.msra.mxu0 0.0
        %1323 = vmatprep.subr.mxu0 0.0
        %1324 = vmatpush1.msra.mxu0 0.0
        %1325 = vmatprep.subr.mxu0 0.0
        %1326 = vmatpush1.msra.mxu0 0.0
        %1327 = vmatprep.subr.mxu0 0.0
        %1328 = vmatpush1.msra.mxu0 0.0
        %1329 = vmatprep.subr.mxu0 0.0
        %1330 = vmatpush1.msra.mxu0 0.0
        %1331 = vmatprep.subr.mxu0 0.0
        %1332 = vmatpush1.msra.mxu0 0.0
        %1333 = vmatprep.subr.mxu0 0.0
        %1334 = vmatpush1.msra.mxu0 0.0
        %1335 = vmatprep.subr.mxu0 0.0
        %1336 = vmatpush1.msra.mxu0 0.0
        %1337 = vmatprep.subr.mxu0 0.0
        %1338 = vmatpush1.msra.mxu0 0.0
        %1339 = vmatprep.subr.mxu0 0.0
        %1340 = vmatpush1.msra.mxu0 0.0
        %1341 = vmatprep.subr.mxu0 0.0
        %1342 = vmatpush1.msra.mxu0 0.0
        %1343 = vmatprep.subr.mxu0 0.0
        %1344 = vmatpush1.msra.mxu0 0.0
        %1345 = vmatprep.subr.mxu0 0.0
        %1346 = vmatpush1.msra.mxu0 0.0
        %1347 = vmatprep.subr.mxu0 0.0
        %1348 = vmatpush1.msra.mxu0 0.0
        %1349 = vmatprep.mubr.f32.mxu0 0.0
        %1350 = vmatmul.mubr.f32.gmra.mrb[0].mxu0 %v1274
        %v1351 = vpop.f32.mrb[0].mxu0
        %v1352 = vadd.f32 0.0, %v1351
        %v1353 = vpop.f32.mrb[0].mxu0
        %1354 = vmatprep.mubr.f32.mxu0 0.0
        %1355 = vmatmul.mubr.f32.gmra.mrb[0].mxu0 %v1277
        %v1356 = vpop.f32.mrb[0].mxu0
        %v1357 = vadd.f32 0.0, %v1356
        %v1358 = vpop.f32.mrb[0].mxu0
        %1359 = vmatprep.mubr.f32.mxu0 0.0
        %1360 = vmatmul.mubr.f32.gmra.mrb[0].mxu0 %v1280
        %v1361 = vpop.f32.mrb[0].mxu0
        %v1362 = vadd.f32 0.0, %v1361
        %v1363 = vpop.f32.mrb[0].mxu0
        %1364 = vmatprep.mubr.f32.mxu0 0.0
        %1365 = vmatmul.mubr.f32.gmra.mrb[0].mxu0 %v1283
        %v1366 = vpop.f32.mrb[0].mxu0
        %v1367 = vadd.f32 0.0, %v1366
        %v1368 = vpop.f32.mrb[0].mxu0
        %1369 = vdwg.mxu0
        %1370 = vrot.lane.b32.xlu0 %v1352, 4
        %v1371 = vpop.permute.xlu0 %1370
        %1372 = vrot.lane.b32.xlu0 %v1357, 4
        %v1373 = vpop.permute.xlu0 %1372
        %v1374 = vsel %vm1253, 0.0, %v1371
        %v1375 = vsel %vm1253, 0.0, %v1373
        %v1376 = vadd.f32 %v1374, %v1362
        %v1377 = vadd.f32 %v1375, %v1367
        %1379 = vset.pattern.permute.xlu0 0
        %1380 = vperm.xlu0 %1379, %v1131
        %v1381 = vpop.permute.xlu0 %1380
        %1384 = vset.pattern.permute.xlu0 0
        %1385 = vperm.xlu0 %1384, %v1132
        %v1386 = vpop.permute.xlu0 %1385
        %v1388 = vadd.f32 %v1376, %v1381
        %v1389 = vadd.f32 %v1377, %v1386
        %v1390 = vmax.f32 %v1388, 0.0
        %v1391 = vmax.f32 %v1389, 0.0
        %1393 = vset.pattern.permute.xlu0 0
        %1394 = vperm.xlu0 %1393, %v1133
        %v1395 = vpop.permute.xlu0 %1394
        %1398 = vset.pattern.permute.xlu0 0
        %1399 = vperm.xlu0 %1398, %v1134
        %v1400 = vpop.permute.xlu0 %1399
        %v1402 = vadd.f32 %v1240, %v1395
        %v1403 = vadd.f32 %v1245, %v1400
        %v1404 = vadd.f32 %v1390, %v1402
        %v1405 = vadd.f32 %v1391, %v1403
        %v1406 = vmax.f32 %v1404, 0.0
        %v1407 = vmax.f32 %v1405, 0.0
        %1408 = vst [vmem:[%s702] sm:$0xff] %v1406
        %1409 = vst [vmem:[%s702 + $0x8] sm:$0xff] %v1407
        %s1410 = sand.u32 %s367, 1
        %s1411 = scalar_lea.sflag [#allocation4], %s1410
        %s1412 = sand.u32 %s367, 1
        %s1413 = smul.addr %s1412, 16
        %s1414 = scalar_lea.vmem [#allocation26], %s1413
        // Predicated region
        $region141: #{tpu_custom_call.1} parent=79 // pred_check
          %p1415 = pneg %p377
        $region142: #{tpu_custom_call.1} parent=79 // pred_check_branch
          %1417 = sbr.rel (%p1415) target = $region144
        $region143: #{tpu_custom_call.1} parent=79 // pred_region
          %s1419 = ssub.s32 256, 256
          %1420 = vsyncadd %s1411, %s1419
          %s1421 = smul.addr %s39, 2
          %s1422 = smul.addr %s1421, 128
          %s1423 = scalar_lea.hbm %s15, %s1422
          %s1424 = sshll.u32 %s1414, 4
          %s1425 = int_to_ptr.vmem [resolvable:$true] %s1424
          %1430 = dma.vmem_to_hbm [thread:$0]  %s1425, 256, %s1423, %s1411, 128, 128, 8
        $region144: #{tpu_custom_call.1} parent=79 // pred_fallthru
          _
      $region80: #{tpu_custom_call.1} parent=5 // pred_fallthru
        _
      %p1431 = scmp.le.s32.totalorder 2, %s34
      // Predicated region
      $region145: #{tpu_custom_call.1} parent=5 // pred_check
        %p1432 = pneg %p1431
      $region146: #{tpu_custom_call.1} parent=5 // pred_check_branch
        %1434 = sbr.rel (%p1432) target = $region148
      $region147: #{tpu_custom_call.1} parent=5 // pred_region
        %s1435 = ssub.s32 %s34, 2
        // Predicated region
        $region149: #{tpu_custom_call.1} parent=147 // pred_check
          %p1436 = pneg %p383
        $region150: #{tpu_custom_call.1} parent=147 // pred_check_branch
          %1438 = sbr.rel (%p1436) target = $region152
        $region151: #{tpu_custom_call.1} parent=147 // pred_region
          %s1439 = sand.u32 %s368, 1
          %s1440 = scalar_lea.sflag [#allocation4], %s1439
          %s1441 = sand.u32 %s368, 1
          %s1442 = smul.addr %s1441, 16
          %s1443 = scalar_lea.vmem [#allocation26], %s1442
          %1444 = dma.done %s1440, 256
        $region152: #{tpu_custom_call.1} parent=147 // pred_fallthru
          _
      $region148: #{tpu_custom_call.1} parent=5 // pred_fallthru
        _
    $region6: #{tpu_custom_call.1} parent=1 // loop_footer
      %s38 = sadd.s32 1, %s34
    $region7: #{tpu_custom_call.1} parent=1 // loop_footer_branch
      %33 = sbr.rel target = $region3
    $region8: #{tpu_custom_call.1} parent=1 // loop_exit
      _
    %1445 = vsyncpa [#allocation3], 1
    %s1446 = scalar_lea.sflag [#allocation3], 1
    %1447 = vsyncpa %s1446, 1
    %1448 = vsyncpa [#allocation6], 1
    %1449 = vsyncpa [#allocation9], 1
    %1450 = vsyncpa [#allocation12], 1
    %1451 = vsyncpa [#allocation15], 1
    %1452 = vsyncpa [#allocation18], 1
    %1453 = vsyncpa [#allocation21], 1
    %1454 = vsyncpa [#allocation24], 1
    %1455 = vsyncpa [#allocation4], 1
    %s1456 = scalar_lea.sflag [#allocation4], 1
    %1457 = vsyncpa %s1456, 1

</llo_original>
